<compile_context>
chip_gen: v5e
topology: v5e:2x2
jax: 0.10.0
libtpu: 0.0.40
codegen_flags: <defaults>
</compile_context>

<pallas_src>
import functools

import jax
import jax.numpy as jnp
from jax.experimental import pallas as pl
from jax.experimental.pallas import tpu as pltpu


def _round_up(v, m):
    return ((v + m - 1) // m) * m


def _vmem_budget_bytes():
    """~75% of physical VMEM: ~96 MiB on v5e/v6e (128 MiB), ~48 MiB on v7x (64 MiB)."""
    cap = None
    try:
        cap = getattr(pltpu.get_tpu_info(), "vmem_capacity_bytes", None)
    except Exception:
        cap = None
    if not cap:
        cap = 64 * 1024 * 1024  # conservative fallback == v7x per-TensorCore VMEM
    return int(cap) * 3 // 4


def _per_row_vmem_bytes(l_pad, hdim, labels_pad, itemsize):
    """Approx. VMEM bytes per batch row of one tile (pipeline buffers + in-kernel temps)."""
    b = l_pad * hdim * (2 * itemsize + 8)   # double-buffered x block + f32 upcast/product temps
    b += 4 * l_pad * 128 * 4                # (lp, 1)-layout score/exp/mask temps (lane-padded)
    b += 2 * l_pad * 4                      # double-buffered lane-dense 2D mask block
    b += 2 * labels_pad * itemsize          # double-buffered output block
    b += 4 * hdim * 4                       # pooled / hidden rows
    return b


def _fixed_vmem_bytes(hdim, labels_pad, itemsize):
    """Resident (single-buffered) weights/biases; w_attn's lane dim pads to 128."""
    return ((hdim * 128 + hdim * hdim + hdim * labels_pad) * itemsize
            + (hdim + 2 * labels_pad) * 4)


def _choose_tile_n(batch, l_pad, hdim, labels_pad, itemsize, vmem_budget):
    """Pick the largest batch tile whose pipelined buffers + temps fit the VMEM budget."""
    n8 = _round_up(max(batch, 1), 8)
    per_row = _per_row_vmem_bytes(l_pad, hdim, labels_pad, itemsize)
    fixed = _fixed_vmem_bytes(hdim, labels_pad, itemsize)
    avail = max(int(vmem_budget * 0.8) - fixed, 8 * per_row)
    tile = max(8, avail // per_row)
    # Keep >= 2 grid steps so the "parallel" batch axis can be split across the two
    # v7x TensorCores; one giant tile would leave a core idle.
    if n8 >= 16:
        tile = min(tile, n8 // 2)
    tile = min(tile, n8)
    # Fill the MXU M dimension once VMEM allows (256 on v6e/v7x, 128 on v5e); otherwise a
    # multiple of 8 (output-block sublane constraint).
    if tile >= 256:
        tile = (tile // 256) * 256
    elif tile >= 128:
        tile = 128
    else:
        tile = max(8, (tile // 8) * 8)
    return int(tile)


def attention1d_head_kernel(x_ref, mask_ref, w_attn_ref, b_attn_ref,
                            w1_ref, b1_ref, w2_ref, b2_ref, out_ref,
                            *, approx_reciprocal):
    tn, lp, hdim = x_ref.shape
    x = x_ref[...]                                            # (TN, Lp, H), native dtype

    # ---- attention scores: 1x1 conv over hidden == H-contraction on the MXU ----
    # (TN, Lp, H) -> (TN*Lp, H) only merges leading dims (lp % 8 == 0): a layout no-op.
    x2d = x.reshape(tn * lp, hdim)
    scores = jnp.dot(x2d, w_attn_ref[...],
                     preferred_element_type=jnp.float32)      # (TN*Lp, 1)
    scores = scores.reshape(tn, lp, 1) + b_attn_ref[0]        # (TN, Lp, 1) f32

    # masked_fill_(~mask, -inf).  The lane-dense 2D mask block is relaid out to the score
    # layout here (tn*lp elements, negligible next to the x tile DMA).  The 3D form is the
    # conservative fallback build.
    mask = mask_ref[...]
    if mask.ndim == 2:
        mask = jnp.reshape(mask, (tn, lp, 1))
    scores = jnp.where(mask > 0, scores, -jnp.inf)

    # ---- numerically stable softmax over L (normalization folded into the pooling) ----
    m = jnp.max(scores, axis=1, keepdims=True)                # (TN, 1, 1)
    e = jnp.exp(scores - m)                                   # (TN, Lp, 1) f32; masked -> 0
    denom = jnp.sum(e, axis=1)                                # (TN, 1)
    inv = pl.reciprocal(denom, approx=approx_reciprocal)      # EUP

    # ---- attention-weighted pooling over L, accumulated in f32 ----
    pooled = jnp.sum(x.astype(jnp.float32) * e, axis=1)       # (TN, H) f32 accumulation
    pooled = pooled * inv                                     # fold 1/sum(e); never build attn

    # ---- projection MLP: linear -> dropout (identity at eval) -> relu -> final ----
    # TODO(synk): nn.Dropout(p=0.25) is treated as identity (inference mode); training-time
    # stochastic masking is not reproduced.
    h = jnp.dot(pooled.astype(w1_ref.dtype), w1_ref[...],
                preferred_element_type=jnp.float32) + b1_ref[...]
    h = jnp.maximum(h, 0.0)
    out = jnp.dot(h.astype(w2_ref.dtype), w2_ref[...],
                  preferred_element_type=jnp.float32) + b2_ref[...]
    out_ref[...] = out.astype(out_ref.dtype)                  # (TN, labels_pad) lane-dense store


def attention1d_pooling_head(x, input_mask, params, *, tile_n=None, approx_reciprocal=True):
    """Attention1dPoolingHead forward (eval mode).

    x: (N, L, H) activations; input_mask: (N, L) with 1 = keep / 0 = drop.
    tile_n: batch rows per grid step.  By default it is auto-sized so that the double-buffered
    x tiles plus in-kernel temporaries fit a generation-aware VMEM budget (size from bytes,
    not a fixed row count).
    approx_reciprocal: use the EUP approximate reciprocal for the softmax normalization
    (~1e-3-level relative error); set False for exact parity with the reference.
    """
    N, L, H = x.shape
    num_labels = params["w2"].shape[1]
    itemsize = jnp.dtype(x.dtype).itemsize

    l_pad = _round_up(L, 8)                    # keeps (TN,L,H) <-> (TN*L,H) a layout no-op
    labels_pad = _round_up(num_labels, 128)    # lane-dense (unmasked vst) output stores
    vmem_budget = _vmem_budget_bytes()

    if tile_n is None:
        tile_n = _choose_tile_n(N, l_pad, H, labels_pad, itemsize, vmem_budget)
    tile_n = max(8, _round_up(int(tile_n), 8))
    n_pad = _round_up(N, tile_n)
    grid = (n_pad // tile_n,)

    # Pad batch / sequence.  Padded sequence positions get mask = 0 (excluded by the softmax);
    # padded batch rows get an all-ones mask so their (discarded) softmax stays finite.  A fully
    # masked *real* row yields NaN, matching PyTorch masked_fill(-inf) + softmax behaviour.
    x_p = jnp.pad(x, ((0, n_pad - N), (0, l_pad - L), (0, 0)))
    mask_p = jnp.pad(input_mask.astype(jnp.float32), ((0, n_pad - N), (0, l_pad - L)))
    row_is_real = (jnp.arange(n_pad) < N)[:, None]
    mask_p = jnp.where(row_is_real, mask_p, 1.0)

    # Matmul weights in x.dtype (native-rate bf16 MXU when x is bf16); biases stay f32 and the
    # adds happen on the f32 accumulators.
    w_attn = params["w_attn"].astype(x.dtype)
    b_attn = params["b_attn"].astype(jnp.float32).reshape(1)
    w1 = params["w1"].astype(x.dtype)
    b1 = params["b1"].reshape(1, H).astype(jnp.float32)
    w2_p = jnp.pad(params["w2"], ((0, 0), (0, labels_pad - num_labels))).astype(x.dtype)
    b2_p = jnp.pad(params["b2"].reshape(1, num_labels),
                   ((0, 0), (0, labels_pad - num_labels))).astype(jnp.float32)

    # VMEM accounting for the chosen tile (per-dtype, mask as the lane-dense 2D block).
    est = (_fixed_vmem_bytes(H, labels_pad, itemsize)
           + tile_n * _per_row_vmem_bytes(l_pad, H, labels_pad, itemsize))
    vmem_limit = int(min(vmem_budget, max(est * 5 // 4, 16 * 1024 * 1024)))

    cost = pl.CostEstimate(
        flops=int(2 * n_pad * l_pad * H            # attention scores
                  + 2 * n_pad * l_pad * H          # weighted pooling
                  + 2 * n_pad * H * H              # first linear
                  + 2 * n_pad * H * labels_pad),   # final linear
        transcendentals=int(n_pad * l_pad + n_pad),
        bytes_accessed=int(x_p.size * itemsize + mask_p.size * 4
                           + (H + H * H + H * labels_pad) * itemsize
                           + (1 + H + labels_pad) * 4
                           + n_pad * labels_pad * itemsize),
    )

    kernel = functools.partial(attention1d_head_kernel, approx_reciprocal=approx_reciprocal)

    def run(mask_2d, single_buffer_weights):
        pm = pl.Buffered(1) if single_buffer_weights else None

        def const_spec(shape):
            # Constant-index weight/bias blocks: single-buffered when supported (their block
            # index never changes, so double-buffering only wastes VMEM).
            if pm is None:
                return pl.BlockSpec(shape, lambda i: (0, 0))
            return pl.BlockSpec(shape, lambda i: (0, 0), pipeline_mode=pm)

        if mask_2d:
            mask_op = mask_p
            mask_spec = pl.BlockSpec((tile_n, l_pad), lambda i: (i, 0))
        else:  # conservative fallback: (N, L, 1) block (lane-sparse but known-good lowering)
            mask_op = mask_p[:, :, None]
            mask_spec = pl.BlockSpec((tile_n, l_pad, 1), lambda i: (i, 0, 0))

        return pl.pallas_call(
            kernel,
            out_shape=jax.ShapeDtypeStruct((n_pad, labels_pad), x.dtype),
            grid=grid,
            in_specs=[
                pl.BlockSpec((tile_n, l_pad, H), lambda i: (i, 0, 0)),   # x tile
                mask_spec,                                               # mask tile
                const_spec((H, 1)),                                      # w_attn
                pl.BlockSpec(memory_space=pltpu.MemorySpace.SMEM),       # b_attn scalar
                const_spec((H, H)),                                      # w1
                const_spec((1, H)),                                      # b1
                const_spec((H, labels_pad)),                             # w2 (lane-padded)
                const_spec((1, labels_pad)),                             # b2 (lane-padded)
            ],
            out_specs=pl.BlockSpec((tile_n, labels_pad), lambda i: (i, 0)),
            compiler_params=pltpu.CompilerParams(
                dimension_semantics=("parallel",),   # batch tiles are independent
                vmem_limit_bytes=vmem_limit,
            ),
            cost_estimate=cost,
        )(x_p, mask_op, w_attn, b_attn, w1, b1, w2_p, b2_p)

    # Preferred build first; fall back to progressively more conservative builds if this JAX /
    # Mosaic version rejects BlockSpec.pipeline_mode or the in-kernel 2D->3D mask relayout.
    out_padded = None
    last_err = None
    for cfg in ((True, True), (True, False), (False, False)):
        try:
            out_padded = run(*cfg)
            break
        except Exception as err:  # noqa: BLE001 - retry with a more conservative build
            last_err = err
    if out_padded is None:
        raise last_err

    return out_padded[:N, :num_labels]


def reference_forward(x, input_mask, params):
    # Pure-JAX reference mirroring the PyTorch module (eval mode: dropout = identity).
    scores = jnp.einsum("nlh,h->nl", x, params["w_attn"][:, 0]) + params["b_attn"][0]
    scores = jnp.where(input_mask > 0, scores, -jnp.inf)
    attn = jax.nn.softmax(scores, axis=-1)
    pooled = jnp.einsum("nl,nlh->nh", attn, x)
    h = jnp.maximum(pooled @ params["w1"] + params["b1"], 0.0)
    return h @ params["w2"] + params["b2"]


if __name__ == "__main__":
    H, NUM_LABELS = 32, 4

    key = jax.random.PRNGKey(0)
    kx1, kw0, kw1, kb1, kw2, kb2, kx2, km2 = jax.random.split(key, 8)

    params = {
        # MaskedConv1d(hidden, 1, kernel_size=1): weight (1, H, 1) -> stored as (H, 1); bias (1,)
        "w_attn": jax.random.normal(kw0, (H, 1), dtype=jnp.float32) * 0.1,
        "b_attn": jnp.array([0.05], dtype=jnp.float32),
        # nn.Linear(H, H): stored transposed as (H, H) plus bias (1, H)
        "w1": jax.random.normal(kw1, (H, H), dtype=jnp.float32) * 0.1,
        "b1": jax.random.normal(kb1, (1, H), dtype=jnp.float32) * 0.1,
        # nn.Linear(H, num_labels): stored transposed as (H, num_labels) plus bias
        "w2": jax.random.normal(kw2, (H, NUM_LABELS), dtype=jnp.float32) * 0.1,
        "b2": jax.random.normal(kb2, (1, NUM_LABELS), dtype=jnp.float32) * 0.1,
    }

    # Case 1: tiny batch, prefix (padding) mask -- matches the module's typical use.
    N1, L1 = 2, 8
    x1 = jax.random.normal(kx1, (N1, L1, H), dtype=jnp.float32)
    mask1 = (jnp.arange(L1)[None, :] < jnp.array([L1, 5])[:, None]).astype(jnp.float32)
    out1 = jax.block_until_ready(attention1d_pooling_head(x1, mask1, params))
    ref1 = reference_forward(x1, mask1, params)
    assert out1.shape == (N1, NUM_LABELS)
    assert jnp.allclose(out1, ref1, atol=1e-3, rtol=1e-3), (out1, ref1)

    # Case 2: batch/sequence needing padding and >= 2 grid steps, arbitrary (non-prefix) mask.
    N2, L2 = 10, 12
    x2 = jax.random.normal(kx2, (N2, L2, H), dtype=jnp.float32)
    mask2 = jax.random.uniform(km2, (N2, L2)) > 0.3
    mask2 = mask2.at[:, 0].set(True).astype(jnp.float32)   # keep every row non-empty
    out2 = jax.block_until_ready(attention1d_pooling_head(x2, mask2, params))
    ref2 = reference_forward(x2, mask2, params)
    assert out2.shape == (N2, NUM_LABELS)
    assert jnp.allclose(out2, ref2, atol=1e-3, rtol=1e-3), (out2, ref2)

    print("KERNEL_OK")
</pallas_src>

<mosaic_0001>
module attributes {stable_mosaic.version = 11 : i64} {
  func.func @attention1d_head_kernel(%arg0: i32, %arg1: memref<8x8x32xf32, #tpu.memory_space<vmem>>, %arg2: memref<8x8xf32, #tpu.memory_space<vmem>>, %arg3: memref<32x1xf32, #tpu.memory_space<vmem>>, %arg4: memref<1xf32, #tpu.memory_space<smem>>, %arg5: memref<32x32xf32, #tpu.memory_space<vmem>>, %arg6: memref<1x32xf32, #tpu.memory_space<vmem>>, %arg7: memref<32x128xf32, #tpu.memory_space<vmem>>, %arg8: memref<1x128xf32, #tpu.memory_space<vmem>>, %arg9: memref<8x128xf32, #tpu.memory_space<vmem>>) attributes {dimension_semantics = [#tpu.dimension_semantics<parallel>], iteration_bounds = array<i64: 1>, scalar_prefetch = 0 : i64, scratch_operands = 0 : i64, tpu.core_type = #tpu.core_type<tc>, window_params = [{transform_indices = @transform_0, window_bounds = array<i64: 8, 8, 32>}, {transform_indices = @transform_1, window_bounds = array<i64: 8, 8>}, {pipeline_mode = #tpu.pipeline_mode<synchronous>, transform_indices = @transform_2, window_bounds = array<i64: 32, 1>}, {transform_indices = @transform_3, window_bounds = array<i64: 1>}, {pipeline_mode = #tpu.pipeline_mode<synchronous>, transform_indices = @transform_4, window_bounds = array<i64: 32, 32>}, {pipeline_mode = #tpu.pipeline_mode<synchronous>, transform_indices = @transform_5, window_bounds = array<i64: 1, 32>}, {pipeline_mode = #tpu.pipeline_mode<synchronous>, transform_indices = @transform_6, window_bounds = array<i64: 32, 128>}, {pipeline_mode = #tpu.pipeline_mode<synchronous>, transform_indices = @transform_7, window_bounds = array<i64: 1, 128>}, {transform_indices = @transform_8, window_bounds = array<i64: 8, 128>}]} {
    %c0 = arith.constant 0 : index
    %c0_0 = arith.constant 0 : index
    %c0_1 = arith.constant 0 : index
    %0 = vector.load %arg1[%c0, %c0_0, %c0_1] : memref<8x8x32xf32, #tpu.memory_space<vmem>>, vector<8x8x32xf32>
    %1 = vector.shape_cast %0 : vector<8x8x32xf32> to vector<64x32xf32>
    %c0_2 = arith.constant 0 : index
    %c0_3 = arith.constant 0 : index
    %2 = vector.load %arg3[%c0_2, %c0_3] : memref<32x1xf32, #tpu.memory_space<vmem>>, vector<32x1xf32>
    %cst = arith.constant dense<0.000000e+00> : vector<64x1xf32>
    %3 = tpu.matmul %1, %2, %cst {dimension_numbers = #tpu.dot_dimension_numbers<[1], [0], [0], [1], [0, 0, 1, 1], [], []>} : vector<64x32xf32>, vector<32x1xf32>, vector<64x1xf32> -> vector<64x1xf32>
    %4 = vector.shape_cast %3 : vector<64x1xf32> to vector<8x8x1xf32>
    %c0_4 = arith.constant 0 : index
    %5 = memref.load %arg4[%c0_4] : memref<1xf32, #tpu.memory_space<smem>>
    %6 = vector.broadcast %5 : f32 to vector<8x8x1xf32>
    %7 = arith.addf %4, %6 : vector<8x8x1xf32>
    %c0_5 = arith.constant 0 : index
    %c0_6 = arith.constant 0 : index
    %8 = vector.load %arg2[%c0_5, %c0_6] : memref<8x8xf32, #tpu.memory_space<vmem>>, vector<8x8xf32>
    %9 = vector.shape_cast %8 : vector<8x8xf32> to vector<8x8x1xf32>
    %cst_7 = arith.constant 0.000000e+00 : f32
    %10 = vector.broadcast %cst_7 : f32 to vector<8x8x1xf32>
    %11 = arith.cmpf ogt, %9, %10 : vector<8x8x1xf32>
    %cst_8 = arith.constant 0xFF800000 : f32
    %12 = vector.broadcast %cst_8 : f32 to vector<8x8x1xf32>
    %13 = arith.select %11, %7, %12 : vector<8x8x1xi1>, vector<8x8x1xf32>
    %cst_9 = arith.constant dense<0xFF800000> : vector<8x1xf32>
    %14 = vector.multi_reduction <maximumf>, %13, %cst_9 [1] : vector<8x8x1xf32> to vector<8x1xf32>
    %15 = vector.shape_cast %14 : vector<8x1xf32> to vector<8x1x1xf32>
    %16 = vector.broadcast %15 : vector<8x1x1xf32> to vector<8x8x1xf32>
    %17 = arith.subf %13, %16 : vector<8x8x1xf32>
    %18 = math.exp %17 : vector<8x8x1xf32>
    %cst_10 = arith.constant dense<0.000000e+00> : vector<8x1xf32>
    %19 = vector.multi_reduction <add>, %18, %cst_10 [1] : vector<8x8x1xf32> to vector<8x1xf32>
    %20 = tpu.reciprocal %19 {approx = true} : vector<8x1xf32> -> vector<8x1xf32>
    %21 = vector.broadcast %18 : vector<8x8x1xf32> to vector<8x8x32xf32>
    %22 = arith.mulf %0, %21 : vector<8x8x32xf32>
    %cst_11 = arith.constant dense<0.000000e+00> : vector<8x32xf32>
    %23 = vector.multi_reduction <add>, %22, %cst_11 [1] : vector<8x8x32xf32> to vector<8x32xf32>
    %24 = vector.broadcast %20 : vector<8x1xf32> to vector<8x32xf32>
    %25 = arith.mulf %23, %24 : vector<8x32xf32>
    %c0_12 = arith.constant 0 : index
    %c0_13 = arith.constant 0 : index
    %26 = vector.load %arg5[%c0_12, %c0_13] : memref<32x32xf32, #tpu.memory_space<vmem>>, vector<32x32xf32>
    %cst_14 = arith.constant dense<0.000000e+00> : vector<8x32xf32>
    %27 = tpu.matmul %25, %26, %cst_14 {dimension_numbers = #tpu.dot_dimension_numbers<[1], [0], [0], [1], [0, 0, 1, 1], [], []>} : vector<8x32xf32>, vector<32x32xf32>, vector<8x32xf32> -> vector<8x32xf32>
    %c0_15 = arith.constant 0 : index
    %c0_16 = arith.constant 0 : index
    %28 = vector.load %arg6[%c0_15, %c0_16] : memref<1x32xf32, #tpu.memory_space<vmem>>, vector<1x32xf32>
    %29 = vector.broadcast %28 : vector<1x32xf32> to vector<8x32xf32>
    %30 = arith.addf %27, %29 : vector<8x32xf32>
    %cst_17 = arith.constant 0.000000e+00 : f32
    %31 = vector.broadcast %cst_17 : f32 to vector<8x32xf32>
    %32 = arith.maximumf %30, %31 : vector<8x32xf32>
    %c0_18 = arith.constant 0 : index
    %c0_19 = arith.constant 0 : index
    %33 = vector.load %arg7[%c0_18, %c0_19] : memref<32x128xf32, #tpu.memory_space<vmem>>, vector<32x128xf32>
    %cst_20 = arith.constant dense<0.000000e+00> : vector<8x128xf32>
    %34 = tpu.matmul %32, %33, %cst_20 {dimension_numbers = #tpu.dot_dimension_numbers<[1], [0], [0], [1], [0, 0, 1, 1], [], []>} : vector<8x32xf32>, vector<32x128xf32>, vector<8x128xf32> -> vector<8x128xf32>
    %c0_21 = arith.constant 0 : index
    %c0_22 = arith.constant 0 : index
    %35 = vector.load %arg8[%c0_21, %c0_22] : memref<1x128xf32, #tpu.memory_space<vmem>>, vector<1x128xf32>
    %36 = vector.broadcast %35 : vector<1x128xf32> to vector<8x128xf32>
    %37 = arith.addf %34, %36 : vector<8x128xf32>
    %c0_23 = arith.constant 0 : index
    %c0_24 = arith.constant 0 : index
    %38 = vector.load %arg9[%c0_23, %c0_24] : memref<8x128xf32, #tpu.memory_space<vmem>>, vector<8x128xf32>
    tpu.vector_store %arg9[%c0_23, %c0_24], %37 {strides = array<i32>} : memref<8x128xf32, #tpu.memory_space<vmem>>, vector<8x128xf32>,
    return
  }
  func.func @transform_0(%arg0: i32) -> (i32, i32, i32) {
    %c0_i32 = arith.constant 0 : i32
    %c0_i32_0 = arith.constant 0 : i32
    %c0_i32_1 = arith.constant 0 : i32
    return %arg0, %c0_i32, %c0_i32_0 : i32, i32, i32
  }
  func.func @transform_1(%arg0: i32) -> (i32, i32) {
    %c0_i32 = arith.constant 0 : i32
    %c0_i32_0 = arith.constant 0 : i32
    return %arg0, %c0_i32 : i32, i32
  }
  func.func @transform_2(%arg0: i32) -> (i32, i32) {
    %c0_i32 = arith.constant 0 : i32
    %c0_i32_0 = arith.constant 0 : i32
    %c0_i32_1 = arith.constant 0 : i32
    return %c0_i32, %c0_i32_0 : i32, i32
  }
  func.func @transform_3(%arg0: i32) -> i32 {
    %c0_i32 = arith.constant 0 : i32
    %c0_i32_0 = arith.constant 0 : i32
    return %c0_i32 : i32
  }
  func.func @transform_4(%arg0: i32) -> (i32, i32) {
    %c0_i32 = arith.constant 0 : i32
    %c0_i32_0 = arith.constant 0 : i32
    %c0_i32_1 = arith.constant 0 : i32
    return %c0_i32, %c0_i32_0 : i32, i32
  }
  func.func @transform_5(%arg0: i32) -> (i32, i32) {
    %c0_i32 = arith.constant 0 : i32
    %c0_i32_0 = arith.constant 0 : i32
    %c0_i32_1 = arith.constant 0 : i32
    return %c0_i32, %c0_i32_0 : i32, i32
  }
  func.func @transform_6(%arg0: i32) -> (i32, i32) {
    %c0_i32 = arith.constant 0 : i32
    %c0_i32_0 = arith.constant 0 : i32
    %c0_i32_1 = arith.constant 0 : i32
    return %c0_i32, %c0_i32_0 : i32, i32
  }
  func.func @transform_7(%arg0: i32) -> (i32, i32) {
    %c0_i32 = arith.constant 0 : i32
    %c0_i32_0 = arith.constant 0 : i32
    %c0_i32_1 = arith.constant 0 : i32
    return %c0_i32, %c0_i32_0 : i32, i32
  }
  func.func @transform_8(%arg0: i32) -> (i32, i32) {
    %c0_i32 = arith.constant 0 : i32
    %c0_i32_0 = arith.constant 0 : i32
    return %arg0, %c0_i32 : i32, i32
  }
}

module attributes {stable_mosaic.version = 11 : i64} {
  func.func @attention1d_head_kernel(%arg0: i32, %arg1: memref<8x8x32xf32, #tpu.memory_space<vmem>>, %arg2: memref<8x8xf32, #tpu.memory_space<vmem>>, %arg3: memref<32x1xf32, #tpu.memory_space<vmem>>, %arg4: memref<1xf32, #tpu.memory_space<smem>>, %arg5: memref<32x32xf32, #tpu.memory_space<vmem>>, %arg6: memref<1x32xf32, #tpu.memory_space<vmem>>, %arg7: memref<32x128xf32, #tpu.memory_space<vmem>>, %arg8: memref<1x128xf32, #tpu.memory_space<vmem>>, %arg9: memref<8x128xf32, #tpu.memory_space<vmem>>) attributes {dimension_semantics = [#tpu.dimension_semantics<parallel>], iteration_bounds = array<i64: 1>, scalar_prefetch = 0 : i64, scratch_operands = 0 : i64, tpu.core_type = #tpu.core_type<tc>, window_params = [{transform_indices = @transform_0, window_bounds = array<i64: 8, 8, 32>}, {transform_indices = @transform_1, window_bounds = array<i64: 8, 8>}, {pipeline_mode = #tpu.pipeline_mode<synchronous>, transform_indices = @transform_2, window_bounds = array<i64: 32, 1>}, {transform_indices = @transform_3, window_bounds = array<i64: 1>}, {pipeline_mode = #tpu.pipeline_mode<synchronous>, transform_indices = @transform_4, window_bounds = array<i64: 32, 32>}, {pipeline_mode = #tpu.pipeline_mode<synchronous>, transform_indices = @transform_5, window_bounds = array<i64: 1, 32>}, {pipeline_mode = #tpu.pipeline_mode<synchronous>, transform_indices = @transform_6, window_bounds = array<i64: 32, 128>}, {pipeline_mode = #tpu.pipeline_mode<synchronous>, transform_indices = @transform_7, window_bounds = array<i64: 1, 128>}, {transform_indices = @transform_8, window_bounds = array<i64: 8, 128>}]} {
    %c0 = arith.constant 0 : index
    %c0_0 = arith.constant 0 : index
    %c0_1 = arith.constant 0 : index
    %0 = vector.load %arg1[%c0, %c0_0, %c0_1] : memref<8x8x32xf32, #tpu.memory_space<vmem>>, vector<8x8x32xf32>
    %1 = vector.shape_cast %0 : vector<8x8x32xf32> to vector<64x32xf32>
    %c0_2 = arith.constant 0 : index
    %c0_3 = arith.constant 0 : index
    %2 = vector.load %arg3[%c0_2, %c0_3] : memref<32x1xf32, #tpu.memory_space<vmem>>, vector<32x1xf32>
    %cst = arith.constant dense<0.000000e+00> : vector<64x1xf32>
    %3 = tpu.matmul %1, %2, %cst {dimension_numbers = #tpu.dot_dimension_numbers<[1], [0], [0], [1], [0, 0, 1, 1], [], []>} : vector<64x32xf32>, vector<32x1xf32>, vector<64x1xf32> -> vector<64x1xf32>
    %4 = vector.shape_cast %3 : vector<64x1xf32> to vector<8x8x1xf32>
    %c0_4 = arith.constant 0 : index
    %5 = memref.load %arg4[%c0_4] : memref<1xf32, #tpu.memory_space<smem>>
    %6 = vector.broadcast %5 : f32 to vector<8x8x1xf32>
    %7 = arith.addf %4, %6 : vector<8x8x1xf32>
    %c0_5 = arith.constant 0 : index
    %c0_6 = arith.constant 0 : index
    %8 = vector.load %arg2[%c0_5, %c0_6] : memref<8x8xf32, #tpu.memory_space<vmem>>, vector<8x8xf32>
    %9 = vector.shape_cast %8 : vector<8x8xf32> to vector<8x8x1xf32>
    %cst_7 = arith.constant 0.000000e+00 : f32
    %10 = vector.broadcast %cst_7 : f32 to vector<8x8x1xf32>
    %11 = arith.cmpf ogt, %9, %10 : vector<8x8x1xf32>
    %cst_8 = arith.constant 0xFF800000 : f32
    %12 = vector.broadcast %cst_8 : f32 to vector<8x8x1xf32>
    %13 = arith.select %11, %7, %12 : vector<8x8x1xi1>, vector<8x8x1xf32>
    %cst_9 = arith.constant dense<0xFF800000> : vector<8x1xf32>
    %14 = vector.multi_reduction <maximumf>, %13, %cst_9 [1] : vector<8x8x1xf32> to vector<8x1xf32>
    %15 = vector.shape_cast %14 : vector<8x1xf32> to vector<8x1x1xf32>
    %16 = vector.broadcast %15 : vector<8x1x1xf32> to vector<8x8x1xf32>
    %17 = arith.subf %13, %16 : vector<8x8x1xf32>
    %18 = math.exp %17 : vector<8x8x1xf32>
    %cst_10 = arith.constant dense<0.000000e+00> : vector<8x1xf32>
    %19 = vector.multi_reduction <add>, %18, %cst_10 [1] : vector<8x8x1xf32> to vector<8x1xf32>
    %20 = tpu.reciprocal %19 {approx = true} : vector<8x1xf32> -> vector<8x1xf32>
    %21 = vector.broadcast %18 : vector<8x8x1xf32> to vector<8x8x32xf32>
    %22 = arith.mulf %0, %21 : vector<8x8x32xf32>
    %cst_11 = arith.constant dense<0.000000e+00> : vector<8x32xf32>
    %23 = vector.multi_reduction <add>, %22, %cst_11 [1] : vector<8x8x32xf32> to vector<8x32xf32>
    %24 = vector.broadcast %20 : vector<8x1xf32> to vector<8x32xf32>
    %25 = arith.mulf %23, %24 : vector<8x32xf32>
    %c0_12 = arith.constant 0 : index
    %c0_13 = arith.constant 0 : index
    %26 = vector.load %arg5[%c0_12, %c0_13] : memref<32x32xf32, #tpu.memory_space<vmem>>, vector<32x32xf32>
    %cst_14 = arith.constant dense<0.000000e+00> : vector<8x32xf32>
    %27 = tpu.matmul %25, %26, %cst_14 {dimension_numbers = #tpu.dot_dimension_numbers<[1], [0], [0], [1], [0, 0, 1, 1], [], []>} : vector<8x32xf32>, vector<32x32xf32>, vector<8x32xf32> -> vector<8x32xf32>
    %c0_15 = arith.constant 0 : index
    %c0_16 = arith.constant 0 : index
    %28 = vector.load %arg6[%c0_15, %c0_16] : memref<1x32xf32, #tpu.memory_space<vmem>>, vector<1x32xf32>
    %29 = vector.broadcast %28 : vector<1x32xf32> to vector<8x32xf32>
    %30 = arith.addf %27, %29 : vector<8x32xf32>
    %cst_17 = arith.constant 0.000000e+00 : f32
    %31 = vector.broadcast %cst_17 : f32 to vector<8x32xf32>
    %32 = arith.maximumf %30, %31 : vector<8x32xf32>
    %c0_18 = arith.constant 0 : index
    %c0_19 = arith.constant 0 : index
    %33 = vector.load %arg7[%c0_18, %c0_19] : memref<32x128xf32, #tpu.memory_space<vmem>>, vector<32x128xf32>
    %cst_20 = arith.constant dense<0.000000e+00> : vector<8x128xf32>
    %34 = tpu.matmul %32, %33, %cst_20 {dimension_numbers = #tpu.dot_dimension_numbers<[1], [0], [0], [1], [0, 0, 1, 1], [], []>} : vector<8x32xf32>, vector<32x128xf32>, vector<8x128xf32> -> vector<8x128xf32>
    %c0_21 = arith.constant 0 : index
    %c0_22 = arith.constant 0 : index
    %35 = vector.load %arg8[%c0_21, %c0_22] : memref<1x128xf32, #tpu.memory_space<vmem>>, vector<1x128xf32>
    %36 = vector.broadcast %35 : vector<1x128xf32> to vector<8x128xf32>
    %37 = arith.addf %34, %36 : vector<8x128xf32>
    %c0_23 = arith.constant 0 : index
    %c0_24 = arith.constant 0 : index
    %38 = vector.load %arg9[%c0_23, %c0_24] : memref<8x128xf32, #tpu.memory_space<vmem>>, vector<8x128xf32>
    tpu.vector_store %arg9[%c0_23, %c0_24], %37 {strides = array<i32>} : memref<8x128xf32, #tpu.memory_space<vmem>>, vector<8x128xf32>,
    return
  }
  func.func @transform_0(%arg0: i32) -> (i32, i32, i32) {
    %c0_i32 = arith.constant 0 : i32
    %c0_i32_0 = arith.constant 0 : i32
    %c0_i32_1 = arith.constant 0 : i32
    return %arg0, %c0_i32, %c0_i32_0 : i32, i32, i32
  }
  func.func @transform_1(%arg0: i32) -> (i32, i32) {
    %c0_i32 = arith.constant 0 : i32
    %c0_i32_0 = arith.constant 0 : i32
    return %arg0, %c0_i32 : i32, i32
  }
  func.func @transform_2(%arg0: i32) -> (i32, i32) {
    %c0_i32 = arith.constant 0 : i32
    %c0_i32_0 = arith.constant 0 : i32
    %c0_i32_1 = arith.constant 0 : i32
    return %c0_i32, %c0_i32_0 : i32, i32
  }
  func.func @transform_3(%arg0: i32) -> i32 {
    %c0_i32 = arith.constant 0 : i32
    %c0_i32_0 = arith.constant 0 : i32
    return %c0_i32 : i32
  }
  func.func @transform_4(%arg0: i32) -> (i32, i32) {
    %c0_i32 = arith.constant 0 : i32
    %c0_i32_0 = arith.constant 0 : i32
    %c0_i32_1 = arith.constant 0 : i32
    return %c0_i32, %c0_i32_0 : i32, i32
  }
  func.func @transform_5(%arg0: i32) -> (i32, i32) {
    %c0_i32 = arith.constant 0 : i32
    %c0_i32_0 = arith.constant 0 : i32
    %c0_i32_1 = arith.constant 0 : i32
    return %c0_i32, %c0_i32_0 : i32, i32
  }
  func.func @transform_6(%arg0: i32) -> (i32, i32) {
    %c0_i32 = arith.constant 0 : i32
    %c0_i32_0 = arith.constant 0 : i32
    %c0_i32_1 = arith.constant 0 : i32
    return %c0_i32, %c0_i32_0 : i32, i32
  }
  func.func @transform_7(%arg0: i32) -> (i32, i32) {
    %c0_i32 = arith.constant 0 : i32
    %c0_i32_0 = arith.constant 0 : i32
    %c0_i32_1 = arith.constant 0 : i32
    return %c0_i32, %c0_i32_0 : i32, i32
  }
  func.func @transform_8(%arg0: i32) -> (i32, i32) {
    %c0_i32 = arith.constant 0 : i32
    %c0_i32_0 = arith.constant 0 : i32
    return %arg0, %c0_i32 : i32, i32
  }
}

module attributes {stable_mosaic.version = 11 : i64} {
  func.func @attention1d_head_kernel(%arg0: i32, %arg1: memref<8x8x32xf32, #tpu.memory_space<vmem>>, %arg2: memref<8x8x1xf32, #tpu.memory_space<vmem>>, %arg3: memref<32x1xf32, #tpu.memory_space<vmem>>, %arg4: memref<1xf32, #tpu.memory_space<smem>>, %arg5: memref<32x32xf32, #tpu.memory_space<vmem>>, %arg6: memref<1x32xf32, #tpu.memory_space<vmem>>, %arg7: memref<32x128xf32, #tpu.memory_space<vmem>>, %arg8: memref<1x128xf32, #tpu.memory_space<vmem>>, %arg9: memref<8x128xf32, #tpu.memory_space<vmem>>) attributes {dimension_semantics = [#tpu.dimension_semantics<parallel>], iteration_bounds = array<i64: 1>, scalar_prefetch = 0 : i64, scratch_operands = 0 : i64, tpu.core_type = #tpu.core_type<tc>, window_params = [{transform_indices = @transform_0, window_bounds = array<i64: 8, 8, 32>}, {transform_indices = @transform_1, window_bounds = array<i64: 8, 8, 1>}, {pipeline_mode = #tpu.pipeline_mode<synchronous>, transform_indices = @transform_2, window_bounds = array<i64: 32, 1>}, {transform_indices = @transform_3, window_bounds = array<i64: 1>}, {pipeline_mode = #tpu.pipeline_mode<synchronous>, transform_indices = @transform_4, window_bounds = array<i64: 32, 32>}, {pipeline_mode = #tpu.pipeline_mode<synchronous>, transform_indices = @transform_5, window_bounds = array<i64: 1, 32>}, {pipeline_mode = #tpu.pipeline_mode<synchronous>, transform_indices = @transform_6, window_bounds = array<i64: 32, 128>}, {pipeline_mode = #tpu.pipeline_mode<synchronous>, transform_indices = @transform_7, window_bounds = array<i64: 1, 128>}, {transform_indices = @transform_8, window_bounds = array<i64: 8, 128>}]} {
    %c0 = arith.constant 0 : index
    %c0_0 = arith.constant 0 : index
    %c0_1 = arith.constant 0 : index
    %0 = vector.load %arg1[%c0, %c0_0, %c0_1] : memref<8x8x32xf32, #tpu.memory_space<vmem>>, vector<8x8x32xf32>
    %1 = vector.shape_cast %0 : vector<8x8x32xf32> to vector<64x32xf32>
    %c0_2 = arith.constant 0 : index
    %c0_3 = arith.constant 0 : index
    %2 = vector.load %arg3[%c0_2, %c0_3] : memref<32x1xf32, #tpu.memory_space<vmem>>, vector<32x1xf32>
    %cst = arith.constant dense<0.000000e+00> : vector<64x1xf32>
    %3 = tpu.matmul %1, %2, %cst {dimension_numbers = #tpu.dot_dimension_numbers<[1], [0], [0], [1], [0, 0, 1, 1], [], []>} : vector<64x32xf32>, vector<32x1xf32>, vector<64x1xf32> -> vector<64x1xf32>
    %4 = vector.shape_cast %3 : vector<64x1xf32> to vector<8x8x1xf32>
    %c0_4 = arith.constant 0 : index
    %5 = memref.load %arg4[%c0_4] : memref<1xf32, #tpu.memory_space<smem>>
    %6 = vector.broadcast %5 : f32 to vector<8x8x1xf32>
    %7 = arith.addf %4, %6 : vector<8x8x1xf32>
    %c0_5 = arith.constant 0 : index
    %c0_6 = arith.constant 0 : index
    %c0_7 = arith.constant 0 : index
    %8 = vector.load %arg2[%c0_5, %c0_6, %c0_7] : memref<8x8x1xf32, #tpu.memory_space<vmem>>, vector<8x8x1xf32>
    %cst_8 = arith.constant 0.000000e+00 : f32
    %9 = vector.broadcast %cst_8 : f32 to vector<8x8x1xf32>
    %10 = arith.cmpf ogt, %8, %9 : vector<8x8x1xf32>
    %cst_9 = arith.constant 0xFF800000 : f32
    %11 = vector.broadcast %cst_9 : f32 to vector<8x8x1xf32>
    %12 = arith.select %10, %7, %11 : vector<8x8x1xi1>, vector<8x8x1xf32>
    %cst_10 = arith.constant dense<0xFF800000> : vector<8x1xf32>
    %13 = vector.multi_reduction <maximumf>, %12, %cst_10 [1] : vector<8x8x1xf32> to vector<8x1xf32>
    %14 = vector.shape_cast %13 : vector<8x1xf32> to vector<8x1x1xf32>
    %15 = vector.broadcast %14 : vector<8x1x1xf32> to vector<8x8x1xf32>
    %16 = arith.subf %12, %15 : vector<8x8x1xf32>
    %17 = math.exp %16 : vector<8x8x1xf32>
    %cst_11 = arith.constant dense<0.000000e+00> : vector<8x1xf32>
    %18 = vector.multi_reduction <add>, %17, %cst_11 [1] : vector<8x8x1xf32> to vector<8x1xf32>
    %19 = tpu.reciprocal %18 {approx = true} : vector<8x1xf32> -> vector<8x1xf32>
    %20 = vector.broadcast %17 : vector<8x8x1xf32> to vector<8x8x32xf32>
    %21 = arith.mulf %0, %20 : vector<8x8x32xf32>
    %cst_12 = arith.constant dense<0.000000e+00> : vector<8x32xf32>
    %22 = vector.multi_reduction <add>, %21, %cst_12 [1] : vector<8x8x32xf32> to vector<8x32xf32>
    %23 = vector.broadcast %19 : vector<8x1xf32> to vector<8x32xf32>
    %24 = arith.mulf %22, %23 : vector<8x32xf32>
    %c0_13 = arith.constant 0 : index
    %c0_14 = arith.constant 0 : index
    %25 = vector.load %arg5[%c0_13, %c0_14] : memref<32x32xf32, #tpu.memory_space<vmem>>, vector<32x32xf32>
    %cst_15 = arith.constant dense<0.000000e+00> : vector<8x32xf32>
    %26 = tpu.matmul %24, %25, %cst_15 {dimension_numbers = #tpu.dot_dimension_numbers<[1], [0], [0], [1], [0, 0, 1, 1], [], []>} : vector<8x32xf32>, vector<32x32xf32>, vector<8x32xf32> -> vector<8x32xf32>
    %c0_16 = arith.constant 0 : index
    %c0_17 = arith.constant 0 : index
    %27 = vector.load %arg6[%c0_16, %c0_17] : memref<1x32xf32, #tpu.memory_space<vmem>>, vector<1x32xf32>
    %28 = vector.broadcast %27 : vector<1x32xf32> to vector<8x32xf32>
    %29 = arith.addf %26, %28 : vector<8x32xf32>
    %cst_18 = arith.constant 0.000000e+00 : f32
    %30 = vector.broadcast %cst_18 : f32 to vector<8x32xf32>
    %31 = arith.maximumf %29, %30 : vector<8x32xf32>
    %c0_19 = arith.constant 0 : index
    %c0_20 = arith.constant 0 : index
    %32 = vector.load %arg7[%c0_19, %c0_20] : memref<32x128xf32, #tpu.memory_space<vmem>>, vector<32x128xf32>
    %cst_21 = arith.constant dense<0.000000e+00> : vector<8x128xf32>
    %33 = tpu.matmul %31, %32, %cst_21 {dimension_numbers = #tpu.dot_dimension_numbers<[1], [0], [0], [1], [0, 0, 1, 1], [], []>} : vector<8x32xf32>, vector<32x128xf32>, vector<8x128xf32> -> vector<8x128xf32>
    %c0_22 = arith.constant 0 : index
    %c0_23 = arith.constant 0 : index
    %34 = vector.load %arg8[%c0_22, %c0_23] : memref<1x128xf32, #tpu.memory_space<vmem>>, vector<1x128xf32>
    %35 = vector.broadcast %34 : vector<1x128xf32> to vector<8x128xf32>
    %36 = arith.addf %33, %35 : vector<8x128xf32>
    %c0_24 = arith.constant 0 : index
    %c0_25 = arith.constant 0 : index
    %37 = vector.load %arg9[%c0_24, %c0_25] : memref<8x128xf32, #tpu.memory_space<vmem>>, vector<8x128xf32>
    tpu.vector_store %arg9[%c0_24, %c0_25], %36 {strides = array<i32>} : memref<8x128xf32, #tpu.memory_space<vmem>>, vector<8x128xf32>,
    return
  }
  func.func @transform_0(%arg0: i32) -> (i32, i32, i32) {
    %c0_i32 = arith.constant 0 : i32
    %c0_i32_0 = arith.constant 0 : i32
    %c0_i32_1 = arith.constant 0 : i32
    return %arg0, %c0_i32, %c0_i32_0 : i32, i32, i32
  }
  func.func @transform_1(%arg0: i32) -> (i32, i32, i32) {
    %c0_i32 = arith.constant 0 : i32
    %c0_i32_0 = arith.constant 0 : i32
    %c0_i32_1 = arith.constant 0 : i32
    return %arg0, %c0_i32, %c0_i32_0 : i32, i32, i32
  }
  func.func @transform_2(%arg0: i32) -> (i32, i32) {
    %c0_i32 = arith.constant 0 : i32
    %c0_i32_0 = arith.constant 0 : i32
    %c0_i32_1 = arith.constant 0 : i32
    return %c0_i32, %c0_i32_0 : i32, i32
  }
  func.func @transform_3(%arg0: i32) -> i32 {
    %c0_i32 = arith.constant 0 : i32
    %c0_i32_0 = arith.constant 0 : i32
    return %c0_i32 : i32
  }
  func.func @transform_4(%arg0: i32) -> (i32, i32) {
    %c0_i32 = arith.constant 0 : i32
    %c0_i32_0 = arith.constant 0 : i32
    %c0_i32_1 = arith.constant 0 : i32
    return %c0_i32, %c0_i32_0 : i32, i32
  }
  func.func @transform_5(%arg0: i32) -> (i32, i32) {
    %c0_i32 = arith.constant 0 : i32
    %c0_i32_0 = arith.constant 0 : i32
    %c0_i32_1 = arith.constant 0 : i32
    return %c0_i32, %c0_i32_0 : i32, i32
  }
  func.func @transform_6(%arg0: i32) -> (i32, i32) {
    %c0_i32 = arith.constant 0 : i32
    %c0_i32_0 = arith.constant 0 : i32
    %c0_i32_1 = arith.constant 0 : i32
    return %c0_i32, %c0_i32_0 : i32, i32
  }
  func.func @transform_7(%arg0: i32) -> (i32, i32) {
    %c0_i32 = arith.constant 0 : i32
    %c0_i32_0 = arith.constant 0 : i32
    %c0_i32_1 = arith.constant 0 : i32
    return %c0_i32, %c0_i32_0 : i32, i32
  }
  func.func @transform_8(%arg0: i32) -> (i32, i32) {
    %c0_i32 = arith.constant 0 : i32
    %c0_i32_0 = arith.constant 0 : i32
    return %arg0, %c0_i32 : i32, i32
  }
}

</mosaic_0001>

<llo_original>
// kernel: tpu_custom_call.1
$region0: #{tpu_custom_call.1}
  #allocation0 [shape = 'u32[]', space=smem, size = 0x4, offset = 0x4, fixed_abs, tag = 'smem constant byte address 0x4 - core index']
  #allocation1 [shape = 'u32[72,128]{1,0:T(1,128)}', space=vmem, size = 0x9000, scoped, tag = 'internal scratch']
  #allocation2 [shape = 'f32[1]{0:T(128)S(6)}', space=smem, size = 0x200, scoped, tag = 'scoped memory for tpu_custom_call.1']
  %s0 = inlined_call_operand.hbm [shape: f32[8,8,32], index: 0, kind: input, shape index: {}]
  %s1 = inlined_call_operand.hbm [shape: f32[8,8], index: 1, kind: input, shape index: {}]
  %s2 = inlined_call_operand.vmem [shape: f32[32,1], index: 2, kind: input, shape index: {}]
  %s3 = inlined_call_operand.<no memory space> [shape: f32[1], index: 3, kind: input, shape index: {}]
  %s4 = inlined_call_operand.vmem [shape: f32[32,32], index: 4, kind: input, shape index: {}]
  %s5 = inlined_call_operand.vmem [shape: f32[1,32], index: 5, kind: input, shape index: {}]
  %s6 = inlined_call_operand.hbm [shape: f32[32,128], index: 6, kind: input, shape index: {}]
  %s7 = inlined_call_operand.vmem [shape: f32[1,128], index: 7, kind: input, shape index: {}]
  %s8 = inlined_call_operand.hbm [shape: f32[8,128], index: 8, kind: output, shape index: {}]
  %s9 = sld [smem:[#allocation0]]
  $region54: #{tpu_custom_call.1} parent=0
    _
  %s11 = ssub.s32 1, %s9
  %s12 = scalar_select 0, %s11, %s9
  %13 = sst [smem:[#allocation2]] %s3
  $region1: #{tpu_custom_call.1} parent=0
    #allocation3 [shape = 'u8[32768]{0}', space=vmem, size = 0x8000, scoped, tag = 'input window, operand 0, single buffered']
    #allocation4 [shape = 's32[1]{0}', space=sflag, size = 0x4, scoped, tag = 'scoped memory for tpu_custom_call.1']
    #allocation5 [shape = 's32[1]{0}', space=sflag, size = 0x4, scoped, tag = 'scoped memory for tpu_custom_call.1']
    #allocation6 [shape = 'u8[4096]{0}', space=vmem, size = 0x1000, scoped, tag = 'input window, operand 1, single buffered']
    #allocation7 [shape = 's32[1]{0}', space=sflag, size = 0x4, scoped, tag = 'scoped memory for tpu_custom_call.1']
    #allocation8 [shape = 'u8[16384]{0}', space=vmem, size = 0x4000, scoped, tag = 'input window, operand 6, single buffered']
    #allocation9 [shape = 'u8[4096]{0}', space=vmem, size = 0x1000, scoped, tag = 'output window, operand 0, single buffered']
    %14 = vsyncpa [#allocation4], 0
    %15 = vsyncpa [#allocation7], 0
    %16 = vsyncpa [#allocation5], 0
    // Predicated region
    $region2: #{tpu_custom_call.1} parent=1 // pred_check
      _
    $region3: #{tpu_custom_call.1} parent=1 // pred_check_branch
      %18 = sbr.rel (0) target = $region5
    $region4: #{tpu_custom_call.1} parent=1 // pred_region
      %20 = vsyncadd [#allocation4], 0
      %s21 = sshll.u32 %s0, 4
      %s22 = int_to_ptr.hbm [resolvable:$true] %s21
      %s23 = sshll.u32 [#allocation3], 4
      %s24 = int_to_ptr.vmem [resolvable:$true] %s23
      %29 = dma.hbm_to_vmem [thread:$0]  %s22, 1024, %s24, [#allocation4], 128, 128, 8
    $region5: #{tpu_custom_call.1} parent=1 // pred_fallthru
      _
    // Predicated region
    $region6: #{tpu_custom_call.1} parent=1 // pred_check
      _
    $region7: #{tpu_custom_call.1} parent=1 // pred_check_branch
      %31 = sbr.rel (0) target = $region9
    $region8: #{tpu_custom_call.1} parent=1 // pred_region
      %33 = vsyncadd [#allocation7], 0
      %s35 = sshll.u32 %s1, 4
      %s36 = int_to_ptr.hbm [resolvable:$true] %s35
      %s37 = sshll.u32 [#allocation6], 4
      %s38 = int_to_ptr.vmem [resolvable:$true] %s37
      %40 = dma.hbm_to_vmem [thread:$0]  %s36, 128, %s38, [#allocation7]
    $region9: #{tpu_custom_call.1} parent=1 // pred_fallthru
      _
    // Predicated region
    $region10: #{tpu_custom_call.1} parent=1 // pred_check
      _
    $region11: #{tpu_custom_call.1} parent=1 // pred_check_branch
      %42 = sbr.rel (0) target = $region13
    $region12: #{tpu_custom_call.1} parent=1 // pred_region
      _
    $region13: #{tpu_custom_call.1} parent=1 // pred_fallthru
      _
    // Predicated region
    $region14: #{tpu_custom_call.1} parent=1 // pred_check
      _
    $region15: #{tpu_custom_call.1} parent=1 // pred_check_branch
      %44 = sbr.rel (0) target = $region17
    $region16: #{tpu_custom_call.1} parent=1 // pred_region
      _
    $region17: #{tpu_custom_call.1} parent=1 // pred_fallthru
      _
    // Predicated region
    $region18: #{tpu_custom_call.1} parent=1 // pred_check
      _
    $region19: #{tpu_custom_call.1} parent=1 // pred_check_branch
      %46 = sbr.rel (0) target = $region21
    $region20: #{tpu_custom_call.1} parent=1 // pred_region
      _
    $region21: #{tpu_custom_call.1} parent=1 // pred_fallthru
      _
    // Predicated region
    $region22: #{tpu_custom_call.1} parent=1 // pred_check
      _
    $region23: #{tpu_custom_call.1} parent=1 // pred_check_branch
      %48 = sbr.rel (0) target = $region25
    $region24: #{tpu_custom_call.1} parent=1 // pred_region
      _
    $region25: #{tpu_custom_call.1} parent=1 // pred_fallthru
      _
    // Predicated region
    $region26: #{tpu_custom_call.1} parent=1 // pred_check
      _
    $region27: #{tpu_custom_call.1} parent=1 // pred_check_branch
      %50 = sbr.rel (0) target = $region29
    $region28: #{tpu_custom_call.1} parent=1 // pred_region
      %52 = vsyncadd [#allocation7], 0
      %s53 = sshll.u32 %s6, 4
      %s54 = int_to_ptr.hbm [resolvable:$true] %s53
      %s55 = sshll.u32 [#allocation8], 4
      %s56 = int_to_ptr.vmem [resolvable:$true] %s55
      %61 = dma.hbm_to_vmem [thread:$0]  %s54, 512, %s56, [#allocation7], 128, 128, 8
    $region29: #{tpu_custom_call.1} parent=1 // pred_fallthru
      _
    // Predicated region
    $region30: #{tpu_custom_call.1} parent=1 // pred_check
      _
    $region31: #{tpu_custom_call.1} parent=1 // pred_check_branch
      %63 = sbr.rel (0) target = $region33
    $region32: #{tpu_custom_call.1} parent=1 // pred_region
      _
    $region33: #{tpu_custom_call.1} parent=1 // pred_fallthru
      _
    // Predicated region
    $region34: #{tpu_custom_call.1} parent=1 // pred_check
      _
    $region35: #{tpu_custom_call.1} parent=1 // pred_check_branch
      %65 = sbr.rel (0) target = $region37
    $region36: #{tpu_custom_call.1} parent=1 // pred_region
      %67 = dma.done [#allocation4], 1024
    $region37: #{tpu_custom_call.1} parent=1 // pred_fallthru
      _
    // Predicated region
    $region38: #{tpu_custom_call.1} parent=1 // pred_check
      _
    $region39: #{tpu_custom_call.1} parent=1 // pred_check_branch
      %69 = sbr.rel (0) target = $region41
    $region40: #{tpu_custom_call.1} parent=1 // pred_region
      %71 = dma.done [#allocation7], 128
    $region41: #{tpu_custom_call.1} parent=1 // pred_fallthru
      _
    // Predicated region
    $region42: #{tpu_custom_call.1} parent=1 // pred_check
      _
    $region43: #{tpu_custom_call.1} parent=1 // pred_check_branch
      %73 = sbr.rel (0) target = $region45
    $region44: #{tpu_custom_call.1} parent=1 // pred_region
      %75 = dma.done [#allocation7], 512
    $region45: #{tpu_custom_call.1} parent=1 // pred_fallthru
      _
    %v76 = vld [vmem:[#allocation3] sm:$0xff]
    %v77 = vld [vmem:[#allocation3 + $0x8] sm:$0xff]
    %v78 = vld [vmem:[#allocation3 + $0x10] sm:$0xff]
    %v79 = vld [vmem:[#allocation3 + $0x18] sm:$0xff]
    %v80 = vld [vmem:[#allocation3 + $0x20] sm:$0xff]
    %v81 = vld [vmem:[#allocation3 + $0x28] sm:$0xff]
    %v82 = vld [vmem:[#allocation3 + $0x30] sm:$0xff]
    %v83 = vld [vmem:[#allocation3 + $0x38] sm:$0xff]
    %v84 = vld [vmem:[%s2] sm:$0xff]
    %v85 = vld [vmem:[%s2 + $0x8] sm:$0xff]
    %v86 = vld [vmem:[%s2 + $0x10] sm:$0xff]
    %v87 = vld [vmem:[%s2 + $0x18] sm:$0xff]
    %vm88 = vcmask 261120
    %v90 = vsel %vm88, %v76, 0
    %v93 = vsel %vm88, %v77, 0
    %v96 = vsel %vm88, %v78, 0
    %v99 = vsel %vm88, %v79, 0
    %v102 = vsel %vm88, %v80, 0
    %v105 = vsel %vm88, %v81, 0
    %v108 = vsel %vm88, %v82, 0
    %v111 = vsel %vm88, %v83, 0
    %113 = vmatpush.msra.mxu0 0.0
    %114 = vmatpush.msra.mxu0 0.0
    %115 = vmatpush.msra.mxu0 0.0
    %116 = vmatpush.msra.mxu0 0.0
    %117 = vmatpush.msra.mxu0 0.0
    %118 = vmatpush.msra.mxu0 0.0
    %119 = vmatpush.msra.mxu0 0.0
    %120 = vmatpush.msra.mxu0 0.0
    %121 = vmatpush.msra.mxu0 0.0
    %122 = vmatpush.msra.mxu0 0.0
    %123 = vmatpush.msra.mxu0 0.0
    %124 = vmatpush.msra.mxu0 0.0
    %125 = vmatpush.msra.mxu0 %v87
    %126 = vmatpush.msra.mxu0 %v86
    %127 = vmatpush.msra.mxu0 %v85
    %128 = vmatpush.msra.mxu0 %v84
    %129 = vmatmul.f32.gmra.mxu0 %v90
    %v130 = vpop.f32.mrf.mxu0
    %v131 = vadd.f32 0.0, %v130
    %132 = vmatmul.f32.gmra.mxu0 %v93
    %v133 = vpop.f32.mrf.mxu0
    %v134 = vadd.f32 0.0, %v133
    %135 = vmatmul.f32.gmra.mxu0 %v96
    %v136 = vpop.f32.mrf.mxu0
    %v137 = vadd.f32 0.0, %v136
    %138 = vmatmul.f32.gmra.mxu0 %v99
    %v139 = vpop.f32.mrf.mxu0
    %v140 = vadd.f32 0.0, %v139
    %141 = vmatmul.f32.gmra.mxu0 %v102
    %v142 = vpop.f32.mrf.mxu0
    %v143 = vadd.f32 0.0, %v142
    %144 = vmatmul.f32.gmra.mxu0 %v105
    %v145 = vpop.f32.mrf.mxu0
    %v146 = vadd.f32 0.0, %v145
    %147 = vmatmul.f32.gmra.mxu0 %v108
    %v148 = vpop.f32.mrf.mxu0
    %v149 = vadd.f32 0.0, %v148
    %150 = vmatmul.f32.gmra.mxu0 %v111
    %v151 = vpop.f32.mrf.mxu0
    %v152 = vadd.f32 0.0, %v151
    %153 = vdwg.mxu0
    %s154 = sld [smem:[#allocation2]]
    %v155 = vstv %s154
    %v156 = vadd.f32 %v131, %v155
    %v157 = vadd.f32 %v134, %v155
    %v158 = vadd.f32 %v137, %v155
    %v159 = vadd.f32 %v140, %v155
    %v160 = vadd.f32 %v143, %v155
    %v161 = vadd.f32 %v146, %v155
    %v162 = vadd.f32 %v149, %v155
    %v163 = vadd.f32 %v152, %v155
    %v164 = vld [vmem:[#allocation6] sm:$0xff]
    %v165 = vperm.slane %v164, 0
    %v166 = vlaneseq
    %v167 = vshrl.u32 %v166, 7
    %169 = vset.pattern.permute.xlu0 %v167
    %170 = vperm.xlu0 %169, %v165
    %v171 = vpop.permute.xlu0 %170
    %v172 = vperm.slane %v164, 1
    %v173 = vlaneseq
    %v174 = vshrl.u32 %v173, 7
    %176 = vset.pattern.permute.xlu0 %v174
    %177 = vperm.xlu0 %176, %v172
    %v178 = vpop.permute.xlu0 %177
    %v179 = vperm.slane %v164, 2
    %v180 = vlaneseq
    %v181 = vshrl.u32 %v180, 7
    %183 = vset.pattern.permute.xlu0 %v181
    %184 = vperm.xlu0 %183, %v179
    %v185 = vpop.permute.xlu0 %184
    %v186 = vperm.slane %v164, 3
    %v187 = vlaneseq
    %v188 = vshrl.u32 %v187, 7
    %190 = vset.pattern.permute.xlu0 %v188
    %191 = vperm.xlu0 %190, %v186
    %v192 = vpop.permute.xlu0 %191
    %v193 = vperm.slane %v164, 4
    %v194 = vlaneseq
    %v195 = vshrl.u32 %v194, 7
    %197 = vset.pattern.permute.xlu0 %v195
    %198 = vperm.xlu0 %197, %v193
    %v199 = vpop.permute.xlu0 %198
    %v200 = vperm.slane %v164, 5
    %v201 = vlaneseq
    %v202 = vshrl.u32 %v201, 7
    %204 = vset.pattern.permute.xlu0 %v202
    %205 = vperm.xlu0 %204, %v200
    %v206 = vpop.permute.xlu0 %205
    %v207 = vperm.slane %v164, 6
    %v208 = vlaneseq
    %v209 = vshrl.u32 %v208, 7
    %211 = vset.pattern.permute.xlu0 %v209
    %212 = vperm.xlu0 %211, %v207
    %v213 = vpop.permute.xlu0 %212
    %v214 = vperm.slane %v164, 7
    %v215 = vlaneseq
    %v216 = vshrl.u32 %v215, 7
    %218 = vset.pattern.permute.xlu0 %v216
    %219 = vperm.xlu0 %218, %v214
    %v220 = vpop.permute.xlu0 %219
    %vm221 = vcmp.gt.f32.partialorder %v171, 0.0
    %vm222 = vcmp.gt.f32.partialorder %v178, 0.0
    %vm223 = vcmp.gt.f32.partialorder %v185, 0.0
    %vm224 = vcmp.gt.f32.partialorder %v192, 0.0
    %vm225 = vcmp.gt.f32.partialorder %v199, 0.0
    %vm226 = vcmp.gt.f32.partialorder %v206, 0.0
    %vm227 = vcmp.gt.f32.partialorder %v213, 0.0
    %vm228 = vcmp.gt.f32.partialorder %v220, 0.0
    %v229 = vsel %vm221, %v156, -inf
    %v230 = vsel %vm222, %v157, -inf
    %v231 = vsel %vm223, %v158, -inf
    %v232 = vsel %vm224, %v159, -inf
    %v233 = vsel %vm225, %v160, -inf
    %v234 = vsel %vm226, %v161, -inf
    %v235 = vsel %vm227, %v162, -inf
    %v236 = vsel %vm228, %v163, -inf
    %vm237 = vcmask 7168
    %v238 = vsel %vm237, %v229, -inf
    %v239 = vrot.slane %v238, 4
    %v240 = vmax.f32 %v238, %v239
    %v241 = vrot.slane %v240, 2
    %v242 = vmax.f32 %v240, %v241
    %v243 = vrot.slane %v242, 1
    %v244 = vmax.f32 %v242, %v243
    %v245 = vsel %vm237, %v230, -inf
    %v246 = vrot.slane %v245, 4
    %v247 = vmax.f32 %v245, %v246
    %v248 = vrot.slane %v247, 2
    %v249 = vmax.f32 %v247, %v248
    %v250 = vrot.slane %v249, 1
    %v251 = vmax.f32 %v249, %v250
    %v252 = vsel %vm237, %v231, -inf
    %v253 = vrot.slane %v252, 4
    %v254 = vmax.f32 %v252, %v253
    %v255 = vrot.slane %v254, 2
    %v256 = vmax.f32 %v254, %v255
    %v257 = vrot.slane %v256, 1
    %v258 = vmax.f32 %v256, %v257
    %v259 = vsel %vm237, %v232, -inf
    %v260 = vrot.slane %v259, 4
    %v261 = vmax.f32 %v259, %v260
    %v262 = vrot.slane %v261, 2
    %v263 = vmax.f32 %v261, %v262
    %v264 = vrot.slane %v263, 1
    %v265 = vmax.f32 %v263, %v264
    %v266 = vsel %vm237, %v233, -inf
    %v267 = vrot.slane %v266, 4
    %v268 = vmax.f32 %v266, %v267
    %v269 = vrot.slane %v268, 2
    %v270 = vmax.f32 %v268, %v269
    %v271 = vrot.slane %v270, 1
    %v272 = vmax.f32 %v270, %v271
    %v273 = vsel %vm237, %v234, -inf
    %v274 = vrot.slane %v273, 4
    %v275 = vmax.f32 %v273, %v274
    %v276 = vrot.slane %v275, 2
    %v277 = vmax.f32 %v275, %v276
    %v278 = vrot.slane %v277, 1
    %v279 = vmax.f32 %v277, %v278
    %v280 = vsel %vm237, %v235, -inf
    %v281 = vrot.slane %v280, 4
    %v282 = vmax.f32 %v280, %v281
    %v283 = vrot.slane %v282, 2
    %v284 = vmax.f32 %v282, %v283
    %v285 = vrot.slane %v284, 1
    %v286 = vmax.f32 %v284, %v285
    %v287 = vsel %vm237, %v236, -inf
    %v288 = vrot.slane %v287, 4
    %v289 = vmax.f32 %v287, %v288
    %v290 = vrot.slane %v289, 2
    %v291 = vmax.f32 %v289, %v290
    %v292 = vrot.slane %v291, 1
    %v293 = vmax.f32 %v291, %v292
    %v294 = vsub.f32 %v229, %v244
    %v295 = vsub.f32 %v230, %v251
    %v296 = vsub.f32 %v231, %v258
    %v297 = vsub.f32 %v232, %v265
    %v298 = vsub.f32 %v233, %v272
    %v299 = vsub.f32 %v234, %v279
    %v300 = vsub.f32 %v235, %v286
    %v301 = vsub.f32 %v236, %v293
    %v302 = vmul.f32 %v294, 1.442695
    %v303 = vpow.pop %v302
    %v304 = vmul.f32 %v295, 1.442695
    %v305 = vpow.pop %v304
    %v306 = vmul.f32 %v296, 1.442695
    %v307 = vpow.pop %v306
    %v308 = vmul.f32 %v297, 1.442695
    %v309 = vpow.pop %v308
    %v310 = vmul.f32 %v298, 1.442695
    %v311 = vpow.pop %v310
    %v312 = vmul.f32 %v299, 1.442695
    %v313 = vpow.pop %v312
    %v314 = vmul.f32 %v300, 1.442695
    %v315 = vpow.pop %v314
    %v316 = vmul.f32 %v301, 1.442695
    %v317 = vpow.pop %v316
    %v318 = vsel %vm237, %v303, 0.0
    %v319 = vrot.slane %v318, 4
    %v320 = vadd.f32 %v318, %v319
    %v321 = vrot.slane %v320, 2
    %v322 = vadd.f32 %v320, %v321
    %v323 = vrot.slane %v322, 1
    %v324 = vadd.f32 %v322, %v323
    %v325 = vsel %vm237, %v305, 0.0
    %v326 = vrot.slane %v325, 4
    %v327 = vadd.f32 %v325, %v326
    %v328 = vrot.slane %v327, 2
    %v329 = vadd.f32 %v327, %v328
    %v330 = vrot.slane %v329, 1
    %v331 = vadd.f32 %v329, %v330
    %v332 = vsel %vm237, %v307, 0.0
    %v333 = vrot.slane %v332, 4
    %v334 = vadd.f32 %v332, %v333
    %v335 = vrot.slane %v334, 2
    %v336 = vadd.f32 %v334, %v335
    %v337 = vrot.slane %v336, 1
    %v338 = vadd.f32 %v336, %v337
    %v339 = vsel %vm237, %v309, 0.0
    %v340 = vrot.slane %v339, 4
    %v341 = vadd.f32 %v339, %v340
    %v342 = vrot.slane %v341, 2
    %v343 = vadd.f32 %v341, %v342
    %v344 = vrot.slane %v343, 1
    %v345 = vadd.f32 %v343, %v344
    %v346 = vsel %vm237, %v311, 0.0
    %v347 = vrot.slane %v346, 4
    %v348 = vadd.f32 %v346, %v347
    %v349 = vrot.slane %v348, 2
    %v350 = vadd.f32 %v348, %v349
    %v351 = vrot.slane %v350, 1
    %v352 = vadd.f32 %v350, %v351
    %v353 = vsel %vm237, %v313, 0.0
    %v354 = vrot.slane %v353, 4
    %v355 = vadd.f32 %v353, %v354
    %v356 = vrot.slane %v355, 2
    %v357 = vadd.f32 %v355, %v356
    %v358 = vrot.slane %v357, 1
    %v359 = vadd.f32 %v357, %v358
    %v360 = vsel %vm237, %v315, 0.0
    %v361 = vrot.slane %v360, 4
    %v362 = vadd.f32 %v360, %v361
    %v363 = vrot.slane %v362, 2
    %v364 = vadd.f32 %v362, %v363
    %v365 = vrot.slane %v364, 1
    %v366 = vadd.f32 %v364, %v365
    %v367 = vsel %vm237, %v317, 0.0
    %v368 = vrot.slane %v367, 4
    %v369 = vadd.f32 %v367, %v368
    %v370 = vrot.slane %v369, 2
    %v371 = vadd.f32 %v369, %v370
    %v372 = vrot.slane %v371, 1
    %v373 = vadd.f32 %v371, %v372
    %v374 = vrcp.pop %v324
    %v375 = vrcp.pop %v331
    %v376 = vrcp.pop %v338
    %v377 = vrcp.pop %v345
    %v378 = vrcp.pop %v352
    %v379 = vrcp.pop %v359
    %v380 = vrcp.pop %v366
    %v381 = vrcp.pop %v373
    %383 = vset.pattern.permute.xlu0 0
    %384 = vperm.xlu0 %383, %v303
    %v385 = vpop.permute.xlu0 %384
    %388 = vset.pattern.permute.xlu0 0
    %389 = vperm.xlu0 %388, %v305
    %v390 = vpop.permute.xlu0 %389
    %393 = vset.pattern.permute.xlu0 0
    %394 = vperm.xlu0 %393, %v307
    %v395 = vpop.permute.xlu0 %394
    %398 = vset.pattern.permute.xlu0 0
    %399 = vperm.xlu0 %398, %v309
    %v400 = vpop.permute.xlu0 %399
    %403 = vset.pattern.permute.xlu0 0
    %404 = vperm.xlu0 %403, %v311
    %v405 = vpop.permute.xlu0 %404
    %408 = vset.pattern.permute.xlu0 0
    %409 = vperm.xlu0 %408, %v313
    %v410 = vpop.permute.xlu0 %409
    %413 = vset.pattern.permute.xlu0 0
    %414 = vperm.xlu0 %413, %v315
    %v415 = vpop.permute.xlu0 %414
    %418 = vset.pattern.permute.xlu0 0
    %419 = vperm.xlu0 %418, %v317
    %v420 = vpop.permute.xlu0 %419
    %v422 = vmul.f32 %v76, %v385
    %v423 = vmul.f32 %v77, %v390
    %v424 = vmul.f32 %v78, %v395
    %v425 = vmul.f32 %v79, %v400
    %v426 = vmul.f32 %v80, %v405
    %v427 = vmul.f32 %v81, %v410
    %v428 = vmul.f32 %v82, %v415
    %v429 = vmul.f32 %v83, %v420
    %v430 = vsel %vm88, %v422, 0.0
    %v431 = vrot.slane %v430, 4
    %v432 = vadd.f32 %v430, %v431
    %v433 = vrot.slane %v432, 2
    %v434 = vadd.f32 %v432, %v433
    %v435 = vrot.slane %v434, 1
    %v436 = vadd.f32 %v434, %v435
    %v437 = vsel %vm88, %v423, 0.0
    %v438 = vrot.slane %v437, 4
    %v439 = vadd.f32 %v437, %v438
    %v440 = vrot.slane %v439, 2
    %v441 = vadd.f32 %v439, %v440
    %v442 = vrot.slane %v441, 1
    %v443 = vadd.f32 %v441, %v442
    %v444 = vsel %vm88, %v424, 0.0
    %v445 = vrot.slane %v444, 4
    %v446 = vadd.f32 %v444, %v445
    %v447 = vrot.slane %v446, 2
    %v448 = vadd.f32 %v446, %v447
    %v449 = vrot.slane %v448, 1
    %v450 = vadd.f32 %v448, %v449
    %v451 = vsel %vm88, %v425, 0.0
    %v452 = vrot.slane %v451, 4
    %v453 = vadd.f32 %v451, %v452
    %v454 = vrot.slane %v453, 2
    %v455 = vadd.f32 %v453, %v454
    %v456 = vrot.slane %v455, 1
    %v457 = vadd.f32 %v455, %v456
    %v458 = vsel %vm88, %v426, 0.0
    %v459 = vrot.slane %v458, 4
    %v460 = vadd.f32 %v458, %v459
    %v461 = vrot.slane %v460, 2
    %v462 = vadd.f32 %v460, %v461
    %v463 = vrot.slane %v462, 1
    %v464 = vadd.f32 %v462, %v463
    %v465 = vsel %vm88, %v427, 0.0
    %v466 = vrot.slane %v465, 4
    %v467 = vadd.f32 %v465, %v466
    %v468 = vrot.slane %v467, 2
    %v469 = vadd.f32 %v467, %v468
    %v470 = vrot.slane %v469, 1
    %v471 = vadd.f32 %v469, %v470
    %v472 = vsel %vm88, %v428, 0.0
    %v473 = vrot.slane %v472, 4
    %v474 = vadd.f32 %v472, %v473
    %v475 = vrot.slane %v474, 2
    %v476 = vadd.f32 %v474, %v475
    %v477 = vrot.slane %v476, 1
    %v478 = vadd.f32 %v476, %v477
    %v479 = vsel %vm88, %v429, 0.0
    %v480 = vrot.slane %v479, 4
    %v481 = vadd.f32 %v479, %v480
    %v482 = vrot.slane %v481, 2
    %v483 = vadd.f32 %v481, %v482
    %v484 = vrot.slane %v483, 1
    %v485 = vadd.f32 %v483, %v484
    %487 = vset.pattern.permute.xlu0 0
    %488 = vperm.xlu0 %487, %v374
    %v489 = vpop.permute.xlu0 %488
    %492 = vset.pattern.permute.xlu0 0
    %493 = vperm.xlu0 %492, %v375
    %v494 = vpop.permute.xlu0 %493
    %497 = vset.pattern.permute.xlu0 0
    %498 = vperm.xlu0 %497, %v376
    %v499 = vpop.permute.xlu0 %498
    %502 = vset.pattern.permute.xlu0 0
    %503 = vperm.xlu0 %502, %v377
    %v504 = vpop.permute.xlu0 %503
    %507 = vset.pattern.permute.xlu0 0
    %508 = vperm.xlu0 %507, %v378
    %v509 = vpop.permute.xlu0 %508
    %512 = vset.pattern.permute.xlu0 0
    %513 = vperm.xlu0 %512, %v379
    %v514 = vpop.permute.xlu0 %513
    %517 = vset.pattern.permute.xlu0 0
    %518 = vperm.xlu0 %517, %v380
    %v519 = vpop.permute.xlu0 %518
    %522 = vset.pattern.permute.xlu0 0
    %523 = vperm.xlu0 %522, %v381
    %v524 = vpop.permute.xlu0 %523
    %v526 = vmul.f32 %v436, %v489
    %v527 = vmul.f32 %v443, %v494
    %v528 = vmul.f32 %v450, %v499
    %v529 = vmul.f32 %v457, %v504
    %v530 = vmul.f32 %v464, %v509
    %v531 = vmul.f32 %v471, %v514
    %v532 = vmul.f32 %v478, %v519
    %v533 = vmul.f32 %v485, %v524
    %v534 = vld [vmem:[%s4] sm:$0xff]
    %v535 = vld [vmem:[%s4 + $0x8] sm:$0xff]
    %v536 = vld [vmem:[%s4 + $0x10] sm:$0xff]
    %v537 = vld [vmem:[%s4 + $0x18] sm:$0xff]
    %v538 = vld [vmem:[%s5] sm:$0x1]
    %v540 = vperm.slane %v538, 0
    %vm550 = vcmask 1041409
    %v551 = vsel %vm550, %v527, %v526
    %vm552 = vcmask 1042434
    %v553 = vsel %vm552, %v528, %v551
    %vm554 = vcmask 1043459
    %v555 = vsel %vm554, %v529, %v553
    %vm556 = vcmask 1044484
    %v557 = vsel %vm556, %v530, %v555
    %vm558 = vcmask 1045509
    %v559 = vsel %vm558, %v531, %v557
    %vm560 = vcmask 1046534
    %v561 = vsel %vm560, %v532, %v559
    %vm562 = vcmask 1047559
    %v563 = vsel %vm562, %v533, %v561
    %v564 = vsel %vm88, %v563, 0
    %566 = vmatpush.msra.mxu0 0.0
    %567 = vmatpush.msra.mxu0 0.0
    %568 = vmatpush.msra.mxu0 0.0
    %569 = vmatpush.msra.mxu0 0.0
    %570 = vmatpush.msra.mxu0 0.0
    %571 = vmatpush.msra.mxu0 0.0
    %572 = vmatpush.msra.mxu0 0.0
    %573 = vmatpush.msra.mxu0 0.0
    %574 = vmatpush.msra.mxu0 0.0
    %575 = vmatpush.msra.mxu0 0.0
    %576 = vmatpush.msra.mxu0 0.0
    %577 = vmatpush.msra.mxu0 0.0
    %578 = vmatpush.msra.mxu0 %v537
    %579 = vmatpush.msra.mxu0 %v536
    %580 = vmatpush.msra.mxu0 %v535
    %581 = vmatpush.msra.mxu0 %v534
    %582 = vmatmul.f32.gmra.mxu0 %v564
    %v583 = vpop.f32.mrf.mxu0
    %v584 = vadd.f32 %v540, %v583
    %585 = vdwg.mxu0
    %v586 = vmax.f32 %v584, 0.0
    %v587 = vld [vmem:[#allocation8] sm:$0xff]
    %v588 = vld [vmem:[#allocation8 + $0x8] sm:$0xff]
    %v589 = vld [vmem:[#allocation8 + $0x10] sm:$0xff]
    %v590 = vld [vmem:[#allocation8 + $0x18] sm:$0xff]
    %v591 = vld [vmem:[%s7] sm:$0x1]
    %v593 = vperm.slane %v591, 0
    %v596 = vsel %vm88, %v586, 0
    %598 = vmatpush.msra.mxu0 0.0
    %599 = vmatpush.msra.mxu0 0.0
    %600 = vmatpush.msra.mxu0 0.0
    %601 = vmatpush.msra.mxu0 0.0
    %602 = vmatpush.msra.mxu0 0.0
    %603 = vmatpush.msra.mxu0 0.0
    %604 = vmatpush.msra.mxu0 0.0
    %605 = vmatpush.msra.mxu0 0.0
    %606 = vmatpush.msra.mxu0 0.0
    %607 = vmatpush.msra.mxu0 0.0
    %608 = vmatpush.msra.mxu0 0.0
    %609 = vmatpush.msra.mxu0 0.0
    %610 = vmatpush.msra.mxu0 %v590
    %611 = vmatpush.msra.mxu0 %v589
    %612 = vmatpush.msra.mxu0 %v588
    %613 = vmatpush.msra.mxu0 %v587
    %614 = vmatmul.f32.gmra.mxu0 %v596
    %v615 = vpop.f32.mrf.mxu0
    %v616 = vadd.f32 %v593, %v615
    %617 = vdwg.mxu0
    %618 = vst [vmem:[#allocation9] sm:$0xff] %v616
    // Predicated region
    $region46: #{tpu_custom_call.1} parent=1 // pred_check
      _
    $region47: #{tpu_custom_call.1} parent=1 // pred_check_branch
      %620 = sbr.rel (0) target = $region49
    $region48: #{tpu_custom_call.1} parent=1 // pred_region
      %622 = vsyncadd [#allocation5], 0
      %s624 = sshll.u32 [#allocation9], 4
      %s625 = int_to_ptr.vmem [resolvable:$true] %s624
      %s626 = sshll.u32 %s8, 4
      %s627 = int_to_ptr.hbm [resolvable:$true] %s626
      %629 = dma.vmem_to_hbm [thread:$0]  %s625, 128, %s627, [#allocation5]
    $region49: #{tpu_custom_call.1} parent=1 // pred_fallthru
      _
    // Predicated region
    $region50: #{tpu_custom_call.1} parent=1 // pred_check
      _
    $region51: #{tpu_custom_call.1} parent=1 // pred_check_branch
      %631 = sbr.rel (0) target = $region53
    $region52: #{tpu_custom_call.1} parent=1 // pred_region
      %633 = dma.done [#allocation5], 128
    $region53: #{tpu_custom_call.1} parent=1 // pred_fallthru
      _
    %634 = vsyncpa [#allocation4], 1
    %635 = vsyncpa [#allocation7], 1
    %636 = vsyncpa [#allocation5], 1

// kernel: tpu_custom_call.1
$region0: #{tpu_custom_call.1}
  #allocation0 [shape = 'u32[]', space=smem, size = 0x4, offset = 0x4, fixed_abs, tag = 'smem constant byte address 0x4 - core index']
  #allocation1 [shape = 'u32[72,128]{1,0:T(1,128)}', space=vmem, size = 0x9000, scoped, tag = 'internal scratch']
  #allocation2 [shape = 'f32[1]{0:T(128)S(6)}', space=smem, size = 0x200, scoped, tag = 'scoped memory for tpu_custom_call.1']
  %s0 = inlined_call_operand.hbm [shape: f32[8,8,32], index: 0, kind: input, shape index: {}]
  %s1 = inlined_call_operand.hbm [shape: f32[8,8], index: 1, kind: input, shape index: {}]
  %s2 = inlined_call_operand.vmem [shape: f32[32,1], index: 2, kind: input, shape index: {}]
  %s3 = inlined_call_operand.<no memory space> [shape: f32[1], index: 3, kind: input, shape index: {}]
  %s4 = inlined_call_operand.vmem [shape: f32[32,32], index: 4, kind: input, shape index: {}]
  %s5 = inlined_call_operand.vmem [shape: f32[1,32], index: 5, kind: input, shape index: {}]
  %s6 = inlined_call_operand.hbm [shape: f32[32,128], index: 6, kind: input, shape index: {}]
  %s7 = inlined_call_operand.vmem [shape: f32[1,128], index: 7, kind: input, shape index: {}]
  %s8 = inlined_call_operand.hbm [shape: f32[8,128], index: 8, kind: output, shape index: {}]
  %s9 = sld [smem:[#allocation0]]
  $region54: #{tpu_custom_call.1} parent=0
    _
  %s11 = ssub.s32 1, %s9
  %s12 = scalar_select 0, %s11, %s9
  %13 = sst [smem:[#allocation2]] %s3
  $region1: #{tpu_custom_call.1} parent=0
    #allocation3 [shape = 'u8[32768]{0}', space=vmem, size = 0x8000, scoped, tag = 'input window, operand 0, single buffered']
    #allocation4 [shape = 's32[1]{0}', space=sflag, size = 0x4, scoped, tag = 'scoped memory for tpu_custom_call.1']
    #allocation5 [shape = 's32[1]{0}', space=sflag, size = 0x4, scoped, tag = 'scoped memory for tpu_custom_call.1']
    #allocation6 [shape = 'u8[4096]{0}', space=vmem, size = 0x1000, scoped, tag = 'input window, operand 1, single buffered']
    #allocation7 [shape = 's32[1]{0}', space=sflag, size = 0x4, scoped, tag = 'scoped memory for tpu_custom_call.1']
    #allocation8 [shape = 'u8[16384]{0}', space=vmem, size = 0x4000, scoped, tag = 'input window, operand 6, single buffered']
    #allocation9 [shape = 'u8[4096]{0}', space=vmem, size = 0x1000, scoped, tag = 'output window, operand 0, single buffered']
    %14 = vsyncpa [#allocation4], 0
    %15 = vsyncpa [#allocation7], 0
    %16 = vsyncpa [#allocation5], 0
    // Predicated region
    $region2: #{tpu_custom_call.1} parent=1 // pred_check
      _
    $region3: #{tpu_custom_call.1} parent=1 // pred_check_branch
      %18 = sbr.rel (0) target = $region5
    $region4: #{tpu_custom_call.1} parent=1 // pred_region
      %20 = vsyncadd [#allocation4], 0
      %s21 = sshll.u32 %s0, 4
      %s22 = int_to_ptr.hbm [resolvable:$true] %s21
      %s23 = sshll.u32 [#allocation3], 4
      %s24 = int_to_ptr.vmem [resolvable:$true] %s23
      %29 = dma.hbm_to_vmem [thread:$0]  %s22, 1024, %s24, [#allocation4], 128, 128, 8
    $region5: #{tpu_custom_call.1} parent=1 // pred_fallthru
      _
    // Predicated region
    $region6: #{tpu_custom_call.1} parent=1 // pred_check
      _
    $region7: #{tpu_custom_call.1} parent=1 // pred_check_branch
      %31 = sbr.rel (0) target = $region9
    $region8: #{tpu_custom_call.1} parent=1 // pred_region
      %33 = vsyncadd [#allocation7], 0
      %s35 = sshll.u32 %s1, 4
      %s36 = int_to_ptr.hbm [resolvable:$true] %s35
      %s37 = sshll.u32 [#allocation6], 4
      %s38 = int_to_ptr.vmem [resolvable:$true] %s37
      %40 = dma.hbm_to_vmem [thread:$0]  %s36, 128, %s38, [#allocation7]
    $region9: #{tpu_custom_call.1} parent=1 // pred_fallthru
      _
    // Predicated region
    $region10: #{tpu_custom_call.1} parent=1 // pred_check
      _
    $region11: #{tpu_custom_call.1} parent=1 // pred_check_branch
      %42 = sbr.rel (0) target = $region13
    $region12: #{tpu_custom_call.1} parent=1 // pred_region
      _
    $region13: #{tpu_custom_call.1} parent=1 // pred_fallthru
      _
    // Predicated region
    $region14: #{tpu_custom_call.1} parent=1 // pred_check
      _
    $region15: #{tpu_custom_call.1} parent=1 // pred_check_branch
      %44 = sbr.rel (0) target = $region17
    $region16: #{tpu_custom_call.1} parent=1 // pred_region
      _
    $region17: #{tpu_custom_call.1} parent=1 // pred_fallthru
      _
    // Predicated region
    $region18: #{tpu_custom_call.1} parent=1 // pred_check
      _
    $region19: #{tpu_custom_call.1} parent=1 // pred_check_branch
      %46 = sbr.rel (0) target = $region21
    $region20: #{tpu_custom_call.1} parent=1 // pred_region
      _
    $region21: #{tpu_custom_call.1} parent=1 // pred_fallthru
      _
    // Predicated region
    $region22: #{tpu_custom_call.1} parent=1 // pred_check
      _
    $region23: #{tpu_custom_call.1} parent=1 // pred_check_branch
      %48 = sbr.rel (0) target = $region25
    $region24: #{tpu_custom_call.1} parent=1 // pred_region
      _
    $region25: #{tpu_custom_call.1} parent=1 // pred_fallthru
      _
    // Predicated region
    $region26: #{tpu_custom_call.1} parent=1 // pred_check
      _
    $region27: #{tpu_custom_call.1} parent=1 // pred_check_branch
      %50 = sbr.rel (0) target = $region29
    $region28: #{tpu_custom_call.1} parent=1 // pred_region
      %52 = vsyncadd [#allocation7], 0
      %s53 = sshll.u32 %s6, 4
      %s54 = int_to_ptr.hbm [resolvable:$true] %s53
      %s55 = sshll.u32 [#allocation8], 4
      %s56 = int_to_ptr.vmem [resolvable:$true] %s55
      %61 = dma.hbm_to_vmem [thread:$0]  %s54, 512, %s56, [#allocation7], 128, 128, 8
    $region29: #{tpu_custom_call.1} parent=1 // pred_fallthru
      _
    // Predicated region
    $region30: #{tpu_custom_call.1} parent=1 // pred_check
      _
    $region31: #{tpu_custom_call.1} parent=1 // pred_check_branch
      %63 = sbr.rel (0) target = $region33
    $region32: #{tpu_custom_call.1} parent=1 // pred_region
      _
    $region33: #{tpu_custom_call.1} parent=1 // pred_fallthru
      _
    // Predicated region
    $region34: #{tpu_custom_call.1} parent=1 // pred_check
      _
    $region35: #{tpu_custom_call.1} parent=1 // pred_check_branch
      %65 = sbr.rel (0) target = $region37
    $region36: #{tpu_custom_call.1} parent=1 // pred_region
      %67 = dma.done [#allocation4], 1024
    $region37: #{tpu_custom_call.1} parent=1 // pred_fallthru
      _
    // Predicated region
    $region38: #{tpu_custom_call.1} parent=1 // pred_check
      _
    $region39: #{tpu_custom_call.1} parent=1 // pred_check_branch
      %69 = sbr.rel (0) target = $region41
    $region40: #{tpu_custom_call.1} parent=1 // pred_region
      %71 = dma.done [#allocation7], 128
    $region41: #{tpu_custom_call.1} parent=1 // pred_fallthru
      _
    // Predicated region
    $region42: #{tpu_custom_call.1} parent=1 // pred_check
      _
    $region43: #{tpu_custom_call.1} parent=1 // pred_check_branch
      %73 = sbr.rel (0) target = $region45
    $region44: #{tpu_custom_call.1} parent=1 // pred_region
      %75 = dma.done [#allocation7], 512
    $region45: #{tpu_custom_call.1} parent=1 // pred_fallthru
      _
    %v76 = vld [vmem:[#allocation3] sm:$0xff]
    %v77 = vld [vmem:[#allocation3 + $0x8] sm:$0xff]
    %v78 = vld [vmem:[#allocation3 + $0x10] sm:$0xff]
    %v79 = vld [vmem:[#allocation3 + $0x18] sm:$0xff]
    %v80 = vld [vmem:[#allocation3 + $0x20] sm:$0xff]
    %v81 = vld [vmem:[#allocation3 + $0x28] sm:$0xff]
    %v82 = vld [vmem:[#allocation3 + $0x30] sm:$0xff]
    %v83 = vld [vmem:[#allocation3 + $0x38] sm:$0xff]
    %v84 = vld [vmem:[%s2] sm:$0xff]
    %v85 = vld [vmem:[%s2 + $0x8] sm:$0xff]
    %v86 = vld [vmem:[%s2 + $0x10] sm:$0xff]
    %v87 = vld [vmem:[%s2 + $0x18] sm:$0xff]
    %vm88 = vcmask 261120
    %v90 = vsel %vm88, %v76, 0
    %v93 = vsel %vm88, %v77, 0
    %v96 = vsel %vm88, %v78, 0
    %v99 = vsel %vm88, %v79, 0
    %v102 = vsel %vm88, %v80, 0
    %v105 = vsel %vm88, %v81, 0
    %v108 = vsel %vm88, %v82, 0
    %v111 = vsel %vm88, %v83, 0
    %113 = vmatpush.msra.mxu0 0.0
    %114 = vmatpush.msra.mxu0 0.0
    %115 = vmatpush.msra.mxu0 0.0
    %116 = vmatpush.msra.mxu0 0.0
    %117 = vmatpush.msra.mxu0 0.0
    %118 = vmatpush.msra.mxu0 0.0
    %119 = vmatpush.msra.mxu0 0.0
    %120 = vmatpush.msra.mxu0 0.0
    %121 = vmatpush.msra.mxu0 0.0
    %122 = vmatpush.msra.mxu0 0.0
    %123 = vmatpush.msra.mxu0 0.0
    %124 = vmatpush.msra.mxu0 0.0
    %125 = vmatpush.msra.mxu0 %v87
    %126 = vmatpush.msra.mxu0 %v86
    %127 = vmatpush.msra.mxu0 %v85
    %128 = vmatpush.msra.mxu0 %v84
    %129 = vmatmul.f32.gmra.mxu0 %v90
    %v130 = vpop.f32.mrf.mxu0
    %v131 = vadd.f32 0.0, %v130
    %132 = vmatmul.f32.gmra.mxu0 %v93
    %v133 = vpop.f32.mrf.mxu0
    %v134 = vadd.f32 0.0, %v133
    %135 = vmatmul.f32.gmra.mxu0 %v96
    %v136 = vpop.f32.mrf.mxu0
    %v137 = vadd.f32 0.0, %v136
    %138 = vmatmul.f32.gmra.mxu0 %v99
    %v139 = vpop.f32.mrf.mxu0
    %v140 = vadd.f32 0.0, %v139
    %141 = vmatmul.f32.gmra.mxu0 %v102
    %v142 = vpop.f32.mrf.mxu0
    %v143 = vadd.f32 0.0, %v142
    %144 = vmatmul.f32.gmra.mxu0 %v105
    %v145 = vpop.f32.mrf.mxu0
    %v146 = vadd.f32 0.0, %v145
    %147 = vmatmul.f32.gmra.mxu0 %v108
    %v148 = vpop.f32.mrf.mxu0
    %v149 = vadd.f32 0.0, %v148
    %150 = vmatmul.f32.gmra.mxu0 %v111
    %v151 = vpop.f32.mrf.mxu0
    %v152 = vadd.f32 0.0, %v151
    %153 = vdwg.mxu0
    %s154 = sld [smem:[#allocation2]]
    %v155 = vstv %s154
    %v156 = vadd.f32 %v131, %v155
    %v157 = vadd.f32 %v134, %v155
    %v158 = vadd.f32 %v137, %v155
    %v159 = vadd.f32 %v140, %v155
    %v160 = vadd.f32 %v143, %v155
    %v161 = vadd.f32 %v146, %v155
    %v162 = vadd.f32 %v149, %v155
    %v163 = vadd.f32 %v152, %v155
    %v164 = vld [vmem:[#allocation6] sm:$0xff]
    %v165 = vperm.slane %v164, 0
    %v166 = vlaneseq
    %v167 = vshrl.u32 %v166, 7
    %169 = vset.pattern.permute.xlu0 %v167
    %170 = vperm.xlu0 %169, %v165
    %v171 = vpop.permute.xlu0 %170
    %v172 = vperm.slane %v164, 1
    %v173 = vlaneseq
    %v174 = vshrl.u32 %v173, 7
    %176 = vset.pattern.permute.xlu0 %v174
    %177 = vperm.xlu0 %176, %v172
    %v178 = vpop.permute.xlu0 %177
    %v179 = vperm.slane %v164, 2
    %v180 = vlaneseq
    %v181 = vshrl.u32 %v180, 7
    %183 = vset.pattern.permute.xlu0 %v181
    %184 = vperm.xlu0 %183, %v179
    %v185 = vpop.permute.xlu0 %184
    %v186 = vperm.slane %v164, 3
    %v187 = vlaneseq
    %v188 = vshrl.u32 %v187, 7
    %190 = vset.pattern.permute.xlu0 %v188
    %191 = vperm.xlu0 %190, %v186
    %v192 = vpop.permute.xlu0 %191
    %v193 = vperm.slane %v164, 4
    %v194 = vlaneseq
    %v195 = vshrl.u32 %v194, 7
    %197 = vset.pattern.permute.xlu0 %v195
    %198 = vperm.xlu0 %197, %v193
    %v199 = vpop.permute.xlu0 %198
    %v200 = vperm.slane %v164, 5
    %v201 = vlaneseq
    %v202 = vshrl.u32 %v201, 7
    %204 = vset.pattern.permute.xlu0 %v202
    %205 = vperm.xlu0 %204, %v200
    %v206 = vpop.permute.xlu0 %205
    %v207 = vperm.slane %v164, 6
    %v208 = vlaneseq
    %v209 = vshrl.u32 %v208, 7
    %211 = vset.pattern.permute.xlu0 %v209
    %212 = vperm.xlu0 %211, %v207
    %v213 = vpop.permute.xlu0 %212
    %v214 = vperm.slane %v164, 7
    %v215 = vlaneseq
    %v216 = vshrl.u32 %v215, 7
    %218 = vset.pattern.permute.xlu0 %v216
    %219 = vperm.xlu0 %218, %v214
    %v220 = vpop.permute.xlu0 %219
    %vm221 = vcmp.gt.f32.partialorder %v171, 0.0
    %vm222 = vcmp.gt.f32.partialorder %v178, 0.0
    %vm223 = vcmp.gt.f32.partialorder %v185, 0.0
    %vm224 = vcmp.gt.f32.partialorder %v192, 0.0
    %vm225 = vcmp.gt.f32.partialorder %v199, 0.0
    %vm226 = vcmp.gt.f32.partialorder %v206, 0.0
    %vm227 = vcmp.gt.f32.partialorder %v213, 0.0
    %vm228 = vcmp.gt.f32.partialorder %v220, 0.0
    %v229 = vsel %vm221, %v156, -inf
    %v230 = vsel %vm222, %v157, -inf
    %v231 = vsel %vm223, %v158, -inf
    %v232 = vsel %vm224, %v159, -inf
    %v233 = vsel %vm225, %v160, -inf
    %v234 = vsel %vm226, %v161, -inf
    %v235 = vsel %vm227, %v162, -inf
    %v236 = vsel %vm228, %v163, -inf
    %vm237 = vcmask 7168
    %v238 = vsel %vm237, %v229, -inf
    %v239 = vrot.slane %v238, 4
    %v240 = vmax.f32 %v238, %v239
    %v241 = vrot.slane %v240, 2
    %v242 = vmax.f32 %v240, %v241
    %v243 = vrot.slane %v242, 1
    %v244 = vmax.f32 %v242, %v243
    %v245 = vsel %vm237, %v230, -inf
    %v246 = vrot.slane %v245, 4
    %v247 = vmax.f32 %v245, %v246
    %v248 = vrot.slane %v247, 2
    %v249 = vmax.f32 %v247, %v248
    %v250 = vrot.slane %v249, 1
    %v251 = vmax.f32 %v249, %v250
    %v252 = vsel %vm237, %v231, -inf
    %v253 = vrot.slane %v252, 4
    %v254 = vmax.f32 %v252, %v253
    %v255 = vrot.slane %v254, 2
    %v256 = vmax.f32 %v254, %v255
    %v257 = vrot.slane %v256, 1
    %v258 = vmax.f32 %v256, %v257
    %v259 = vsel %vm237, %v232, -inf
    %v260 = vrot.slane %v259, 4
    %v261 = vmax.f32 %v259, %v260
    %v262 = vrot.slane %v261, 2
    %v263 = vmax.f32 %v261, %v262
    %v264 = vrot.slane %v263, 1
    %v265 = vmax.f32 %v263, %v264
    %v266 = vsel %vm237, %v233, -inf
    %v267 = vrot.slane %v266, 4
    %v268 = vmax.f32 %v266, %v267
    %v269 = vrot.slane %v268, 2
    %v270 = vmax.f32 %v268, %v269
    %v271 = vrot.slane %v270, 1
    %v272 = vmax.f32 %v270, %v271
    %v273 = vsel %vm237, %v234, -inf
    %v274 = vrot.slane %v273, 4
    %v275 = vmax.f32 %v273, %v274
    %v276 = vrot.slane %v275, 2
    %v277 = vmax.f32 %v275, %v276
    %v278 = vrot.slane %v277, 1
    %v279 = vmax.f32 %v277, %v278
    %v280 = vsel %vm237, %v235, -inf
    %v281 = vrot.slane %v280, 4
    %v282 = vmax.f32 %v280, %v281
    %v283 = vrot.slane %v282, 2
    %v284 = vmax.f32 %v282, %v283
    %v285 = vrot.slane %v284, 1
    %v286 = vmax.f32 %v284, %v285
    %v287 = vsel %vm237, %v236, -inf
    %v288 = vrot.slane %v287, 4
    %v289 = vmax.f32 %v287, %v288
    %v290 = vrot.slane %v289, 2
    %v291 = vmax.f32 %v289, %v290
    %v292 = vrot.slane %v291, 1
    %v293 = vmax.f32 %v291, %v292
    %v294 = vsub.f32 %v229, %v244
    %v295 = vsub.f32 %v230, %v251
    %v296 = vsub.f32 %v231, %v258
    %v297 = vsub.f32 %v232, %v265
    %v298 = vsub.f32 %v233, %v272
    %v299 = vsub.f32 %v234, %v279
    %v300 = vsub.f32 %v235, %v286
    %v301 = vsub.f32 %v236, %v293
    %v302 = vmul.f32 %v294, 1.442695
    %v303 = vpow.pop %v302
    %v304 = vmul.f32 %v295, 1.442695
    %v305 = vpow.pop %v304
    %v306 = vmul.f32 %v296, 1.442695
    %v307 = vpow.pop %v306
    %v308 = vmul.f32 %v297, 1.442695
    %v309 = vpow.pop %v308
    %v310 = vmul.f32 %v298, 1.442695
    %v311 = vpow.pop %v310
    %v312 = vmul.f32 %v299, 1.442695
    %v313 = vpow.pop %v312
    %v314 = vmul.f32 %v300, 1.442695
    %v315 = vpow.pop %v314
    %v316 = vmul.f32 %v301, 1.442695
    %v317 = vpow.pop %v316
    %v318 = vsel %vm237, %v303, 0.0
    %v319 = vrot.slane %v318, 4
    %v320 = vadd.f32 %v318, %v319
    %v321 = vrot.slane %v320, 2
    %v322 = vadd.f32 %v320, %v321
    %v323 = vrot.slane %v322, 1
    %v324 = vadd.f32 %v322, %v323
    %v325 = vsel %vm237, %v305, 0.0
    %v326 = vrot.slane %v325, 4
    %v327 = vadd.f32 %v325, %v326
    %v328 = vrot.slane %v327, 2
    %v329 = vadd.f32 %v327, %v328
    %v330 = vrot.slane %v329, 1
    %v331 = vadd.f32 %v329, %v330
    %v332 = vsel %vm237, %v307, 0.0
    %v333 = vrot.slane %v332, 4
    %v334 = vadd.f32 %v332, %v333
    %v335 = vrot.slane %v334, 2
    %v336 = vadd.f32 %v334, %v335
    %v337 = vrot.slane %v336, 1
    %v338 = vadd.f32 %v336, %v337
    %v339 = vsel %vm237, %v309, 0.0
    %v340 = vrot.slane %v339, 4
    %v341 = vadd.f32 %v339, %v340
    %v342 = vrot.slane %v341, 2
    %v343 = vadd.f32 %v341, %v342
    %v344 = vrot.slane %v343, 1
    %v345 = vadd.f32 %v343, %v344
    %v346 = vsel %vm237, %v311, 0.0
    %v347 = vrot.slane %v346, 4
    %v348 = vadd.f32 %v346, %v347
    %v349 = vrot.slane %v348, 2
    %v350 = vadd.f32 %v348, %v349
    %v351 = vrot.slane %v350, 1
    %v352 = vadd.f32 %v350, %v351
    %v353 = vsel %vm237, %v313, 0.0
    %v354 = vrot.slane %v353, 4
    %v355 = vadd.f32 %v353, %v354
    %v356 = vrot.slane %v355, 2
    %v357 = vadd.f32 %v355, %v356
    %v358 = vrot.slane %v357, 1
    %v359 = vadd.f32 %v357, %v358
    %v360 = vsel %vm237, %v315, 0.0
    %v361 = vrot.slane %v360, 4
    %v362 = vadd.f32 %v360, %v361
    %v363 = vrot.slane %v362, 2
    %v364 = vadd.f32 %v362, %v363
    %v365 = vrot.slane %v364, 1
    %v366 = vadd.f32 %v364, %v365
    %v367 = vsel %vm237, %v317, 0.0
    %v368 = vrot.slane %v367, 4
    %v369 = vadd.f32 %v367, %v368
    %v370 = vrot.slane %v369, 2
    %v371 = vadd.f32 %v369, %v370
    %v372 = vrot.slane %v371, 1
    %v373 = vadd.f32 %v371, %v372
    %v374 = vrcp.pop %v324
    %v375 = vrcp.pop %v331
    %v376 = vrcp.pop %v338
    %v377 = vrcp.pop %v345
    %v378 = vrcp.pop %v352
    %v379 = vrcp.pop %v359
    %v380 = vrcp.pop %v366
    %v381 = vrcp.pop %v373
    %383 = vset.pattern.permute.xlu0 0
    %384 = vperm.xlu0 %383, %v303
    %v385 = vpop.permute.xlu0 %384
    %388 = vset.pattern.permute.xlu0 0
    %389 = vperm.xlu0 %388, %v305
    %v390 = vpop.permute.xlu0 %389
    %393 = vset.pattern.permute.xlu0 0
    %394 = vperm.xlu0 %393, %v307
    %v395 = vpop.permute.xlu0 %394
    %398 = vset.pattern.permute.xlu0 0
    %399 = vperm.xlu0 %398, %v309
    %v400 = vpop.permute.xlu0 %399
    %403 = vset.pattern.permute.xlu0 0
    %404 = vperm.xlu0 %403, %v311
    %v405 = vpop.permute.xlu0 %404
    %408 = vset.pattern.permute.xlu0 0
    %409 = vperm.xlu0 %408, %v313
    %v410 = vpop.permute.xlu0 %409
    %413 = vset.pattern.permute.xlu0 0
    %414 = vperm.xlu0 %413, %v315
    %v415 = vpop.permute.xlu0 %414
    %418 = vset.pattern.permute.xlu0 0
    %419 = vperm.xlu0 %418, %v317
    %v420 = vpop.permute.xlu0 %419
    %v422 = vmul.f32 %v76, %v385
    %v423 = vmul.f32 %v77, %v390
    %v424 = vmul.f32 %v78, %v395
    %v425 = vmul.f32 %v79, %v400
    %v426 = vmul.f32 %v80, %v405
    %v427 = vmul.f32 %v81, %v410
    %v428 = vmul.f32 %v82, %v415
    %v429 = vmul.f32 %v83, %v420
    %v430 = vsel %vm88, %v422, 0.0
    %v431 = vrot.slane %v430, 4
    %v432 = vadd.f32 %v430, %v431
    %v433 = vrot.slane %v432, 2
    %v434 = vadd.f32 %v432, %v433
    %v435 = vrot.slane %v434, 1
    %v436 = vadd.f32 %v434, %v435
    %v437 = vsel %vm88, %v423, 0.0
    %v438 = vrot.slane %v437, 4
    %v439 = vadd.f32 %v437, %v438
    %v440 = vrot.slane %v439, 2
    %v441 = vadd.f32 %v439, %v440
    %v442 = vrot.slane %v441, 1
    %v443 = vadd.f32 %v441, %v442
    %v444 = vsel %vm88, %v424, 0.0
    %v445 = vrot.slane %v444, 4
    %v446 = vadd.f32 %v444, %v445
    %v447 = vrot.slane %v446, 2
    %v448 = vadd.f32 %v446, %v447
    %v449 = vrot.slane %v448, 1
    %v450 = vadd.f32 %v448, %v449
    %v451 = vsel %vm88, %v425, 0.0
    %v452 = vrot.slane %v451, 4
    %v453 = vadd.f32 %v451, %v452
    %v454 = vrot.slane %v453, 2
    %v455 = vadd.f32 %v453, %v454
    %v456 = vrot.slane %v455, 1
    %v457 = vadd.f32 %v455, %v456
    %v458 = vsel %vm88, %v426, 0.0
    %v459 = vrot.slane %v458, 4
    %v460 = vadd.f32 %v458, %v459
    %v461 = vrot.slane %v460, 2
    %v462 = vadd.f32 %v460, %v461
    %v463 = vrot.slane %v462, 1
    %v464 = vadd.f32 %v462, %v463
    %v465 = vsel %vm88, %v427, 0.0
    %v466 = vrot.slane %v465, 4
    %v467 = vadd.f32 %v465, %v466
    %v468 = vrot.slane %v467, 2
    %v469 = vadd.f32 %v467, %v468
    %v470 = vrot.slane %v469, 1
    %v471 = vadd.f32 %v469, %v470
    %v472 = vsel %vm88, %v428, 0.0
    %v473 = vrot.slane %v472, 4
    %v474 = vadd.f32 %v472, %v473
    %v475 = vrot.slane %v474, 2
    %v476 = vadd.f32 %v474, %v475
    %v477 = vrot.slane %v476, 1
    %v478 = vadd.f32 %v476, %v477
    %v479 = vsel %vm88, %v429, 0.0
    %v480 = vrot.slane %v479, 4
    %v481 = vadd.f32 %v479, %v480
    %v482 = vrot.slane %v481, 2
    %v483 = vadd.f32 %v481, %v482
    %v484 = vrot.slane %v483, 1
    %v485 = vadd.f32 %v483, %v484
    %487 = vset.pattern.permute.xlu0 0
    %488 = vperm.xlu0 %487, %v374
    %v489 = vpop.permute.xlu0 %488
    %492 = vset.pattern.permute.xlu0 0
    %493 = vperm.xlu0 %492, %v375
    %v494 = vpop.permute.xlu0 %493
    %497 = vset.pattern.permute.xlu0 0
    %498 = vperm.xlu0 %497, %v376
    %v499 = vpop.permute.xlu0 %498
    %502 = vset.pattern.permute.xlu0 0
    %503 = vperm.xlu0 %502, %v377
    %v504 = vpop.permute.xlu0 %503
    %507 = vset.pattern.permute.xlu0 0
    %508 = vperm.xlu0 %507, %v378
    %v509 = vpop.permute.xlu0 %508
    %512 = vset.pattern.permute.xlu0 0
    %513 = vperm.xlu0 %512, %v379
    %v514 = vpop.permute.xlu0 %513
    %517 = vset.pattern.permute.xlu0 0
    %518 = vperm.xlu0 %517, %v380
    %v519 = vpop.permute.xlu0 %518
    %522 = vset.pattern.permute.xlu0 0
    %523 = vperm.xlu0 %522, %v381
    %v524 = vpop.permute.xlu0 %523
    %v526 = vmul.f32 %v436, %v489
    %v527 = vmul.f32 %v443, %v494
    %v528 = vmul.f32 %v450, %v499
    %v529 = vmul.f32 %v457, %v504
    %v530 = vmul.f32 %v464, %v509
    %v531 = vmul.f32 %v471, %v514
    %v532 = vmul.f32 %v478, %v519
    %v533 = vmul.f32 %v485, %v524
    %v534 = vld [vmem:[%s4] sm:$0xff]
    %v535 = vld [vmem:[%s4 + $0x8] sm:$0xff]
    %v536 = vld [vmem:[%s4 + $0x10] sm:$0xff]
    %v537 = vld [vmem:[%s4 + $0x18] sm:$0xff]
    %v538 = vld [vmem:[%s5] sm:$0x1]
    %v540 = vperm.slane %v538, 0
    %vm550 = vcmask 1041409
    %v551 = vsel %vm550, %v527, %v526
    %vm552 = vcmask 1042434
    %v553 = vsel %vm552, %v528, %v551
    %vm554 = vcmask 1043459
    %v555 = vsel %vm554, %v529, %v553
    %vm556 = vcmask 1044484
    %v557 = vsel %vm556, %v530, %v555
    %vm558 = vcmask 1045509
    %v559 = vsel %vm558, %v531, %v557
    %vm560 = vcmask 1046534
    %v561 = vsel %vm560, %v532, %v559
    %vm562 = vcmask 1047559
    %v563 = vsel %vm562, %v533, %v561
    %v564 = vsel %vm88, %v563, 0
    %566 = vmatpush.msra.mxu0 0.0
    %567 = vmatpush.msra.mxu0 0.0
    %568 = vmatpush.msra.mxu0 0.0
    %569 = vmatpush.msra.mxu0 0.0
    %570 = vmatpush.msra.mxu0 0.0
    %571 = vmatpush.msra.mxu0 0.0
    %572 = vmatpush.msra.mxu0 0.0
    %573 = vmatpush.msra.mxu0 0.0
    %574 = vmatpush.msra.mxu0 0.0
    %575 = vmatpush.msra.mxu0 0.0
    %576 = vmatpush.msra.mxu0 0.0
    %577 = vmatpush.msra.mxu0 0.0
    %578 = vmatpush.msra.mxu0 %v537
    %579 = vmatpush.msra.mxu0 %v536
    %580 = vmatpush.msra.mxu0 %v535
    %581 = vmatpush.msra.mxu0 %v534
    %582 = vmatmul.f32.gmra.mxu0 %v564
    %v583 = vpop.f32.mrf.mxu0
    %v584 = vadd.f32 %v540, %v583
    %585 = vdwg.mxu0
    %v586 = vmax.f32 %v584, 0.0
    %v587 = vld [vmem:[#allocation8] sm:$0xff]
    %v588 = vld [vmem:[#allocation8 + $0x8] sm:$0xff]
    %v589 = vld [vmem:[#allocation8 + $0x10] sm:$0xff]
    %v590 = vld [vmem:[#allocation8 + $0x18] sm:$0xff]
    %v591 = vld [vmem:[%s7] sm:$0x1]
    %v593 = vperm.slane %v591, 0
    %v596 = vsel %vm88, %v586, 0
    %598 = vmatpush.msra.mxu0 0.0
    %599 = vmatpush.msra.mxu0 0.0
    %600 = vmatpush.msra.mxu0 0.0
    %601 = vmatpush.msra.mxu0 0.0
    %602 = vmatpush.msra.mxu0 0.0
    %603 = vmatpush.msra.mxu0 0.0
    %604 = vmatpush.msra.mxu0 0.0
    %605 = vmatpush.msra.mxu0 0.0
    %606 = vmatpush.msra.mxu0 0.0
    %607 = vmatpush.msra.mxu0 0.0
    %608 = vmatpush.msra.mxu0 0.0
    %609 = vmatpush.msra.mxu0 0.0
    %610 = vmatpush.msra.mxu0 %v590
    %611 = vmatpush.msra.mxu0 %v589
    %612 = vmatpush.msra.mxu0 %v588
    %613 = vmatpush.msra.mxu0 %v587
    %614 = vmatmul.f32.gmra.mxu0 %v596
    %v615 = vpop.f32.mrf.mxu0
    %v616 = vadd.f32 %v593, %v615
    %617 = vdwg.mxu0
    %618 = vst [vmem:[#allocation9] sm:$0xff] %v616
    // Predicated region
    $region46: #{tpu_custom_call.1} parent=1 // pred_check
      _
    $region47: #{tpu_custom_call.1} parent=1 // pred_check_branch
      %620 = sbr.rel (0) target = $region49
    $region48: #{tpu_custom_call.1} parent=1 // pred_region
      %622 = vsyncadd [#allocation5], 0
      %s624 = sshll.u32 [#allocation9], 4
      %s625 = int_to_ptr.vmem [resolvable:$true] %s624
      %s626 = sshll.u32 %s8, 4
      %s627 = int_to_ptr.hbm [resolvable:$true] %s626
      %629 = dma.vmem_to_hbm [thread:$0]  %s625, 128, %s627, [#allocation5]
    $region49: #{tpu_custom_call.1} parent=1 // pred_fallthru
      _
    // Predicated region
    $region50: #{tpu_custom_call.1} parent=1 // pred_check
      _
    $region51: #{tpu_custom_call.1} parent=1 // pred_check_branch
      %631 = sbr.rel (0) target = $region53
    $region52: #{tpu_custom_call.1} parent=1 // pred_region
      %633 = dma.done [#allocation5], 128
    $region53: #{tpu_custom_call.1} parent=1 // pred_fallthru
      _
    %634 = vsyncpa [#allocation4], 1
    %635 = vsyncpa [#allocation7], 1
    %636 = vsyncpa [#allocation5], 1

// kernel: tpu_custom_call.1
$region0: #{tpu_custom_call.1}
  #allocation0 [shape = 'u32[]', space=smem, size = 0x4, offset = 0x4, fixed_abs, tag = 'smem constant byte address 0x4 - core index']
  #allocation1 [shape = 'u32[72,128]{1,0:T(1,128)}', space=vmem, size = 0x9000, scoped, tag = 'internal scratch']
  #allocation2 [shape = 'f32[1]{0:T(128)S(6)}', space=smem, size = 0x200, scoped, tag = 'scoped memory for tpu_custom_call.1']
  %s0 = inlined_call_operand.vmem [shape: f32[8,8,32], index: 0, kind: input, shape index: {}]
  %s1 = inlined_call_operand.vmem [shape: f32[8,8,1], index: 1, kind: input, shape index: {}]
  %s2 = inlined_call_operand.vmem [shape: f32[32,1], index: 2, kind: input, shape index: {}]
  %s3 = inlined_call_operand.<no memory space> [shape: f32[1], index: 3, kind: input, shape index: {}]
  %s4 = inlined_call_operand.vmem [shape: f32[32,32], index: 4, kind: input, shape index: {}]
  %s5 = inlined_call_operand.vmem [shape: f32[1,32], index: 5, kind: input, shape index: {}]
  %s6 = inlined_call_operand.hbm [shape: f32[32,128], index: 6, kind: input, shape index: {}]
  %s7 = inlined_call_operand.vmem [shape: f32[1,128], index: 7, kind: input, shape index: {}]
  %s8 = inlined_call_operand.hbm [shape: f32[8,128], index: 8, kind: output, shape index: {}]
  %s9 = sld [smem:[#allocation0]]
  $region46: #{tpu_custom_call.1} parent=0
    _
  %s11 = ssub.s32 1, %s9
  %s12 = scalar_select 0, %s11, %s9
  %13 = sst [smem:[#allocation2]] %s3
  $region1: #{tpu_custom_call.1} parent=0
    #allocation3 [shape = 'u8[16384]{0}', space=vmem, size = 0x4000, scoped, tag = 'input window, operand 6, single buffered']
    #allocation4 [shape = 's32[1]{0}', space=sflag, size = 0x4, scoped, tag = 'scoped memory for tpu_custom_call.1']
    #allocation5 [shape = 's32[1]{0}', space=sflag, size = 0x4, scoped, tag = 'scoped memory for tpu_custom_call.1']
    #allocation6 [shape = 'u8[4096]{0}', space=vmem, size = 0x1000, scoped, tag = 'output window, operand 0, single buffered']
    %14 = vsyncpa [#allocation4], 0
    %15 = vsyncpa [#allocation5], 0
    // Predicated region
    $region2: #{tpu_custom_call.1} parent=1 // pred_check
      _
    $region3: #{tpu_custom_call.1} parent=1 // pred_check_branch
      %17 = sbr.rel (0) target = $region5
    $region4: #{tpu_custom_call.1} parent=1 // pred_region
      _
    $region5: #{tpu_custom_call.1} parent=1 // pred_fallthru
      _
    // Predicated region
    $region6: #{tpu_custom_call.1} parent=1 // pred_check
      _
    $region7: #{tpu_custom_call.1} parent=1 // pred_check_branch
      %19 = sbr.rel (0) target = $region9
    $region8: #{tpu_custom_call.1} parent=1 // pred_region
      _
    $region9: #{tpu_custom_call.1} parent=1 // pred_fallthru
      _
    // Predicated region
    $region10: #{tpu_custom_call.1} parent=1 // pred_check
      _
    $region11: #{tpu_custom_call.1} parent=1 // pred_check_branch
      %21 = sbr.rel (0) target = $region13
    $region12: #{tpu_custom_call.1} parent=1 // pred_region
      _
    $region13: #{tpu_custom_call.1} parent=1 // pred_fallthru
      _
    // Predicated region
    $region14: #{tpu_custom_call.1} parent=1 // pred_check
      _
    $region15: #{tpu_custom_call.1} parent=1 // pred_check_branch
      %23 = sbr.rel (0) target = $region17
    $region16: #{tpu_custom_call.1} parent=1 // pred_region
      _
    $region17: #{tpu_custom_call.1} parent=1 // pred_fallthru
      _
    // Predicated region
    $region18: #{tpu_custom_call.1} parent=1 // pred_check
      _
    $region19: #{tpu_custom_call.1} parent=1 // pred_check_branch
      %25 = sbr.rel (0) target = $region21
    $region20: #{tpu_custom_call.1} parent=1 // pred_region
      _
    $region21: #{tpu_custom_call.1} parent=1 // pred_fallthru
      _
    // Predicated region
    $region22: #{tpu_custom_call.1} parent=1 // pred_check
      _
    $region23: #{tpu_custom_call.1} parent=1 // pred_check_branch
      %27 = sbr.rel (0) target = $region25
    $region24: #{tpu_custom_call.1} parent=1 // pred_region
      _
    $region25: #{tpu_custom_call.1} parent=1 // pred_fallthru
      _
    // Predicated region
    $region26: #{tpu_custom_call.1} parent=1 // pred_check
      _
    $region27: #{tpu_custom_call.1} parent=1 // pred_check_branch
      %29 = sbr.rel (0) target = $region29
    $region28: #{tpu_custom_call.1} parent=1 // pred_region
      %31 = vsyncadd [#allocation4], 0
      %s32 = sshll.u32 %s6, 4
      %s33 = int_to_ptr.hbm [resolvable:$true] %s32
      %s34 = sshll.u32 [#allocation3], 4
      %s35 = int_to_ptr.vmem [resolvable:$true] %s34
      %40 = dma.hbm_to_vmem [thread:$0]  %s33, 512, %s35, [#allocation4], 128, 128, 8
    $region29: #{tpu_custom_call.1} parent=1 // pred_fallthru
      _
    // Predicated region
    $region30: #{tpu_custom_call.1} parent=1 // pred_check
      _
    $region31: #{tpu_custom_call.1} parent=1 // pred_check_branch
      %42 = sbr.rel (0) target = $region33
    $region32: #{tpu_custom_call.1} parent=1 // pred_region
      _
    $region33: #{tpu_custom_call.1} parent=1 // pred_fallthru
      _
    // Predicated region
    $region34: #{tpu_custom_call.1} parent=1 // pred_check
      _
    $region35: #{tpu_custom_call.1} parent=1 // pred_check_branch
      %44 = sbr.rel (0) target = $region37
    $region36: #{tpu_custom_call.1} parent=1 // pred_region
      %46 = dma.done [#allocation4], 512
    $region37: #{tpu_custom_call.1} parent=1 // pred_fallthru
      _
    %v47 = vld [vmem:[%s0] sm:$0xff]
    %v48 = vld [vmem:[%s0 + $0x8] sm:$0xff]
    %v49 = vld [vmem:[%s0 + $0x10] sm:$0xff]
    %v50 = vld [vmem:[%s0 + $0x18] sm:$0xff]
    %v51 = vld [vmem:[%s0 + $0x20] sm:$0xff]
    %v52 = vld [vmem:[%s0 + $0x28] sm:$0xff]
    %v53 = vld [vmem:[%s0 + $0x30] sm:$0xff]
    %v54 = vld [vmem:[%s0 + $0x38] sm:$0xff]
    %v55 = vld [vmem:[%s2] sm:$0xff]
    %v56 = vld [vmem:[%s2 + $0x8] sm:$0xff]
    %v57 = vld [vmem:[%s2 + $0x10] sm:$0xff]
    %v58 = vld [vmem:[%s2 + $0x18] sm:$0xff]
    %vm59 = vcmask 261120
    %v61 = vsel %vm59, %v47, 0
    %v64 = vsel %vm59, %v48, 0
    %v67 = vsel %vm59, %v49, 0
    %v70 = vsel %vm59, %v50, 0
    %v73 = vsel %vm59, %v51, 0
    %v76 = vsel %vm59, %v52, 0
    %v79 = vsel %vm59, %v53, 0
    %v82 = vsel %vm59, %v54, 0
    %84 = vmatpush.msra.mxu0 0.0
    %85 = vmatpush.msra.mxu0 0.0
    %86 = vmatpush.msra.mxu0 0.0
    %87 = vmatpush.msra.mxu0 0.0
    %88 = vmatpush.msra.mxu0 0.0
    %89 = vmatpush.msra.mxu0 0.0
    %90 = vmatpush.msra.mxu0 0.0
    %91 = vmatpush.msra.mxu0 0.0
    %92 = vmatpush.msra.mxu0 0.0
    %93 = vmatpush.msra.mxu0 0.0
    %94 = vmatpush.msra.mxu0 0.0
    %95 = vmatpush.msra.mxu0 0.0
    %96 = vmatpush.msra.mxu0 %v58
    %97 = vmatpush.msra.mxu0 %v57
    %98 = vmatpush.msra.mxu0 %v56
    %99 = vmatpush.msra.mxu0 %v55
    %100 = vmatmul.f32.gmra.mxu0 %v61
    %v101 = vpop.f32.mrf.mxu0
    %v102 = vadd.f32 0.0, %v101
    %103 = vmatmul.f32.gmra.mxu0 %v64
    %v104 = vpop.f32.mrf.mxu0
    %v105 = vadd.f32 0.0, %v104
    %106 = vmatmul.f32.gmra.mxu0 %v67
    %v107 = vpop.f32.mrf.mxu0
    %v108 = vadd.f32 0.0, %v107
    %109 = vmatmul.f32.gmra.mxu0 %v70
    %v110 = vpop.f32.mrf.mxu0
    %v111 = vadd.f32 0.0, %v110
    %112 = vmatmul.f32.gmra.mxu0 %v73
    %v113 = vpop.f32.mrf.mxu0
    %v114 = vadd.f32 0.0, %v113
    %115 = vmatmul.f32.gmra.mxu0 %v76
    %v116 = vpop.f32.mrf.mxu0
    %v117 = vadd.f32 0.0, %v116
    %118 = vmatmul.f32.gmra.mxu0 %v79
    %v119 = vpop.f32.mrf.mxu0
    %v120 = vadd.f32 0.0, %v119
    %121 = vmatmul.f32.gmra.mxu0 %v82
    %v122 = vpop.f32.mrf.mxu0
    %v123 = vadd.f32 0.0, %v122
    %124 = vdwg.mxu0
    %s125 = sld [smem:[#allocation2]]
    %v126 = vstv %s125
    %v127 = vadd.f32 %v102, %v126
    %v128 = vadd.f32 %v105, %v126
    %v129 = vadd.f32 %v108, %v126
    %v130 = vadd.f32 %v111, %v126
    %v131 = vadd.f32 %v114, %v126
    %v132 = vadd.f32 %v117, %v126
    %v133 = vadd.f32 %v120, %v126
    %v134 = vadd.f32 %v123, %v126
    %v135 = vld [vmem:[%s1] sm:$0xff]
    %v136 = vld [vmem:[%s1 + $0x8] sm:$0xff]
    %v137 = vld [vmem:[%s1 + $0x10] sm:$0xff]
    %v138 = vld [vmem:[%s1 + $0x18] sm:$0xff]
    %v139 = vld [vmem:[%s1 + $0x20] sm:$0xff]
    %v140 = vld [vmem:[%s1 + $0x28] sm:$0xff]
    %v141 = vld [vmem:[%s1 + $0x30] sm:$0xff]
    %v142 = vld [vmem:[%s1 + $0x38] sm:$0xff]
    %vm143 = vcmp.gt.f32.partialorder %v135, 0.0
    %vm144 = vcmp.gt.f32.partialorder %v136, 0.0
    %vm145 = vcmp.gt.f32.partialorder %v137, 0.0
    %vm146 = vcmp.gt.f32.partialorder %v138, 0.0
    %vm147 = vcmp.gt.f32.partialorder %v139, 0.0
    %vm148 = vcmp.gt.f32.partialorder %v140, 0.0
    %vm149 = vcmp.gt.f32.partialorder %v141, 0.0
    %vm150 = vcmp.gt.f32.partialorder %v142, 0.0
    %v151 = vsel %vm143, %v127, -inf
    %v152 = vsel %vm144, %v128, -inf
    %v153 = vsel %vm145, %v129, -inf
    %v154 = vsel %vm146, %v130, -inf
    %v155 = vsel %vm147, %v131, -inf
    %v156 = vsel %vm148, %v132, -inf
    %v157 = vsel %vm149, %v133, -inf
    %v158 = vsel %vm150, %v134, -inf
    %vm159 = vcmask 7168
    %v160 = vsel %vm159, %v151, -inf
    %v161 = vrot.slane %v160, 4
    %v162 = vmax.f32 %v160, %v161
    %v163 = vrot.slane %v162, 2
    %v164 = vmax.f32 %v162, %v163
    %v165 = vrot.slane %v164, 1
    %v166 = vmax.f32 %v164, %v165
    %v167 = vsel %vm159, %v152, -inf
    %v168 = vrot.slane %v167, 4
    %v169 = vmax.f32 %v167, %v168
    %v170 = vrot.slane %v169, 2
    %v171 = vmax.f32 %v169, %v170
    %v172 = vrot.slane %v171, 1
    %v173 = vmax.f32 %v171, %v172
    %v174 = vsel %vm159, %v153, -inf
    %v175 = vrot.slane %v174, 4
    %v176 = vmax.f32 %v174, %v175
    %v177 = vrot.slane %v176, 2
    %v178 = vmax.f32 %v176, %v177
    %v179 = vrot.slane %v178, 1
    %v180 = vmax.f32 %v178, %v179
    %v181 = vsel %vm159, %v154, -inf
    %v182 = vrot.slane %v181, 4
    %v183 = vmax.f32 %v181, %v182
    %v184 = vrot.slane %v183, 2
    %v185 = vmax.f32 %v183, %v184
    %v186 = vrot.slane %v185, 1
    %v187 = vmax.f32 %v185, %v186
    %v188 = vsel %vm159, %v155, -inf
    %v189 = vrot.slane %v188, 4
    %v190 = vmax.f32 %v188, %v189
    %v191 = vrot.slane %v190, 2
    %v192 = vmax.f32 %v190, %v191
    %v193 = vrot.slane %v192, 1
    %v194 = vmax.f32 %v192, %v193
    %v195 = vsel %vm159, %v156, -inf
    %v196 = vrot.slane %v195, 4
    %v197 = vmax.f32 %v195, %v196
    %v198 = vrot.slane %v197, 2
    %v199 = vmax.f32 %v197, %v198
    %v200 = vrot.slane %v199, 1
    %v201 = vmax.f32 %v199, %v200
    %v202 = vsel %vm159, %v157, -inf
    %v203 = vrot.slane %v202, 4
    %v204 = vmax.f32 %v202, %v203
    %v205 = vrot.slane %v204, 2
    %v206 = vmax.f32 %v204, %v205
    %v207 = vrot.slane %v206, 1
    %v208 = vmax.f32 %v206, %v207
    %v209 = vsel %vm159, %v158, -inf
    %v210 = vrot.slane %v209, 4
    %v211 = vmax.f32 %v209, %v210
    %v212 = vrot.slane %v211, 2
    %v213 = vmax.f32 %v211, %v212
    %v214 = vrot.slane %v213, 1
    %v215 = vmax.f32 %v213, %v214
    %v216 = vsub.f32 %v151, %v166
    %v217 = vsub.f32 %v152, %v173
    %v218 = vsub.f32 %v153, %v180
    %v219 = vsub.f32 %v154, %v187
    %v220 = vsub.f32 %v155, %v194
    %v221 = vsub.f32 %v156, %v201
    %v222 = vsub.f32 %v157, %v208
    %v223 = vsub.f32 %v158, %v215
    %v224 = vmul.f32 %v216, 1.442695
    %v225 = vpow.pop %v224
    %v226 = vmul.f32 %v217, 1.442695
    %v227 = vpow.pop %v226
    %v228 = vmul.f32 %v218, 1.442695
    %v229 = vpow.pop %v228
    %v230 = vmul.f32 %v219, 1.442695
    %v231 = vpow.pop %v230
    %v232 = vmul.f32 %v220, 1.442695
    %v233 = vpow.pop %v232
    %v234 = vmul.f32 %v221, 1.442695
    %v235 = vpow.pop %v234
    %v236 = vmul.f32 %v222, 1.442695
    %v237 = vpow.pop %v236
    %v238 = vmul.f32 %v223, 1.442695
    %v239 = vpow.pop %v238
    %v240 = vsel %vm159, %v225, 0.0
    %v241 = vrot.slane %v240, 4
    %v242 = vadd.f32 %v240, %v241
    %v243 = vrot.slane %v242, 2
    %v244 = vadd.f32 %v242, %v243
    %v245 = vrot.slane %v244, 1
    %v246 = vadd.f32 %v244, %v245
    %v247 = vsel %vm159, %v227, 0.0
    %v248 = vrot.slane %v247, 4
    %v249 = vadd.f32 %v247, %v248
    %v250 = vrot.slane %v249, 2
    %v251 = vadd.f32 %v249, %v250
    %v252 = vrot.slane %v251, 1
    %v253 = vadd.f32 %v251, %v252
    %v254 = vsel %vm159, %v229, 0.0
    %v255 = vrot.slane %v254, 4
    %v256 = vadd.f32 %v254, %v255
    %v257 = vrot.slane %v256, 2
    %v258 = vadd.f32 %v256, %v257
    %v259 = vrot.slane %v258, 1
    %v260 = vadd.f32 %v258, %v259
    %v261 = vsel %vm159, %v231, 0.0
    %v262 = vrot.slane %v261, 4
    %v263 = vadd.f32 %v261, %v262
    %v264 = vrot.slane %v263, 2
    %v265 = vadd.f32 %v263, %v264
    %v266 = vrot.slane %v265, 1
    %v267 = vadd.f32 %v265, %v266
    %v268 = vsel %vm159, %v233, 0.0
    %v269 = vrot.slane %v268, 4
    %v270 = vadd.f32 %v268, %v269
    %v271 = vrot.slane %v270, 2
    %v272 = vadd.f32 %v270, %v271
    %v273 = vrot.slane %v272, 1
    %v274 = vadd.f32 %v272, %v273
    %v275 = vsel %vm159, %v235, 0.0
    %v276 = vrot.slane %v275, 4
    %v277 = vadd.f32 %v275, %v276
    %v278 = vrot.slane %v277, 2
    %v279 = vadd.f32 %v277, %v278
    %v280 = vrot.slane %v279, 1
    %v281 = vadd.f32 %v279, %v280
    %v282 = vsel %vm159, %v237, 0.0
    %v283 = vrot.slane %v282, 4
    %v284 = vadd.f32 %v282, %v283
    %v285 = vrot.slane %v284, 2
    %v286 = vadd.f32 %v284, %v285
    %v287 = vrot.slane %v286, 1
    %v288 = vadd.f32 %v286, %v287
    %v289 = vsel %vm159, %v239, 0.0
    %v290 = vrot.slane %v289, 4
    %v291 = vadd.f32 %v289, %v290
    %v292 = vrot.slane %v291, 2
    %v293 = vadd.f32 %v291, %v292
    %v294 = vrot.slane %v293, 1
    %v295 = vadd.f32 %v293, %v294
    %v296 = vrcp.pop %v246
    %v297 = vrcp.pop %v253
    %v298 = vrcp.pop %v260
    %v299 = vrcp.pop %v267
    %v300 = vrcp.pop %v274
    %v301 = vrcp.pop %v281
    %v302 = vrcp.pop %v288
    %v303 = vrcp.pop %v295
    %305 = vset.pattern.permute.xlu0 0
    %306 = vperm.xlu0 %305, %v225
    %v307 = vpop.permute.xlu0 %306
    %310 = vset.pattern.permute.xlu0 0
    %311 = vperm.xlu0 %310, %v227
    %v312 = vpop.permute.xlu0 %311
    %315 = vset.pattern.permute.xlu0 0
    %316 = vperm.xlu0 %315, %v229
    %v317 = vpop.permute.xlu0 %316
    %320 = vset.pattern.permute.xlu0 0
    %321 = vperm.xlu0 %320, %v231
    %v322 = vpop.permute.xlu0 %321
    %325 = vset.pattern.permute.xlu0 0
    %326 = vperm.xlu0 %325, %v233
    %v327 = vpop.permute.xlu0 %326
    %330 = vset.pattern.permute.xlu0 0
    %331 = vperm.xlu0 %330, %v235
    %v332 = vpop.permute.xlu0 %331
    %335 = vset.pattern.permute.xlu0 0
    %336 = vperm.xlu0 %335, %v237
    %v337 = vpop.permute.xlu0 %336
    %340 = vset.pattern.permute.xlu0 0
    %341 = vperm.xlu0 %340, %v239
    %v342 = vpop.permute.xlu0 %341
    %v344 = vmul.f32 %v47, %v307
    %v345 = vmul.f32 %v48, %v312
    %v346 = vmul.f32 %v49, %v317
    %v347 = vmul.f32 %v50, %v322
    %v348 = vmul.f32 %v51, %v327
    %v349 = vmul.f32 %v52, %v332
    %v350 = vmul.f32 %v53, %v337
    %v351 = vmul.f32 %v54, %v342
    %v352 = vsel %vm59, %v344, 0.0
    %v353 = vrot.slane %v352, 4
    %v354 = vadd.f32 %v352, %v353
    %v355 = vrot.slane %v354, 2
    %v356 = vadd.f32 %v354, %v355
    %v357 = vrot.slane %v356, 1
    %v358 = vadd.f32 %v356, %v357
    %v359 = vsel %vm59, %v345, 0.0
    %v360 = vrot.slane %v359, 4
    %v361 = vadd.f32 %v359, %v360
    %v362 = vrot.slane %v361, 2
    %v363 = vadd.f32 %v361, %v362
    %v364 = vrot.slane %v363, 1
    %v365 = vadd.f32 %v363, %v364
    %v366 = vsel %vm59, %v346, 0.0
    %v367 = vrot.slane %v366, 4
    %v368 = vadd.f32 %v366, %v367
    %v369 = vrot.slane %v368, 2
    %v370 = vadd.f32 %v368, %v369
    %v371 = vrot.slane %v370, 1
    %v372 = vadd.f32 %v370, %v371
    %v373 = vsel %vm59, %v347, 0.0
    %v374 = vrot.slane %v373, 4
    %v375 = vadd.f32 %v373, %v374
    %v376 = vrot.slane %v375, 2
    %v377 = vadd.f32 %v375, %v376
    %v378 = vrot.slane %v377, 1
    %v379 = vadd.f32 %v377, %v378
    %v380 = vsel %vm59, %v348, 0.0
    %v381 = vrot.slane %v380, 4
    %v382 = vadd.f32 %v380, %v381
    %v383 = vrot.slane %v382, 2
    %v384 = vadd.f32 %v382, %v383
    %v385 = vrot.slane %v384, 1
    %v386 = vadd.f32 %v384, %v385
    %v387 = vsel %vm59, %v349, 0.0
    %v388 = vrot.slane %v387, 4
    %v389 = vadd.f32 %v387, %v388
    %v390 = vrot.slane %v389, 2
    %v391 = vadd.f32 %v389, %v390
    %v392 = vrot.slane %v391, 1
    %v393 = vadd.f32 %v391, %v392
    %v394 = vsel %vm59, %v350, 0.0
    %v395 = vrot.slane %v394, 4
    %v396 = vadd.f32 %v394, %v395
    %v397 = vrot.slane %v396, 2
    %v398 = vadd.f32 %v396, %v397
    %v399 = vrot.slane %v398, 1
    %v400 = vadd.f32 %v398, %v399
    %v401 = vsel %vm59, %v351, 0.0
    %v402 = vrot.slane %v401, 4
    %v403 = vadd.f32 %v401, %v402
    %v404 = vrot.slane %v403, 2
    %v405 = vadd.f32 %v403, %v404
    %v406 = vrot.slane %v405, 1
    %v407 = vadd.f32 %v405, %v406
    %409 = vset.pattern.permute.xlu0 0
    %410 = vperm.xlu0 %409, %v296
    %v411 = vpop.permute.xlu0 %410
    %414 = vset.pattern.permute.xlu0 0
    %415 = vperm.xlu0 %414, %v297
    %v416 = vpop.permute.xlu0 %415
    %419 = vset.pattern.permute.xlu0 0
    %420 = vperm.xlu0 %419, %v298
    %v421 = vpop.permute.xlu0 %420
    %424 = vset.pattern.permute.xlu0 0
    %425 = vperm.xlu0 %424, %v299
    %v426 = vpop.permute.xlu0 %425
    %429 = vset.pattern.permute.xlu0 0
    %430 = vperm.xlu0 %429, %v300
    %v431 = vpop.permute.xlu0 %430
    %434 = vset.pattern.permute.xlu0 0
    %435 = vperm.xlu0 %434, %v301
    %v436 = vpop.permute.xlu0 %435
    %439 = vset.pattern.permute.xlu0 0
    %440 = vperm.xlu0 %439, %v302
    %v441 = vpop.permute.xlu0 %440
    %444 = vset.pattern.permute.xlu0 0
    %445 = vperm.xlu0 %444, %v303
    %v446 = vpop.permute.xlu0 %445
    %v448 = vmul.f32 %v358, %v411
    %v449 = vmul.f32 %v365, %v416
    %v450 = vmul.f32 %v372, %v421
    %v451 = vmul.f32 %v379, %v426
    %v452 = vmul.f32 %v386, %v431
    %v453 = vmul.f32 %v393, %v436
    %v454 = vmul.f32 %v400, %v441
    %v455 = vmul.f32 %v407, %v446
    %v456 = vld [vmem:[%s4] sm:$0xff]
    %v457 = vld [vmem:[%s4 + $0x8] sm:$0xff]
    %v458 = vld [vmem:[%s4 + $0x10] sm:$0xff]
    %v459 = vld [vmem:[%s4 + $0x18] sm:$0xff]
    %v460 = vld [vmem:[%s5] sm:$0x1]
    %v462 = vperm.slane %v460, 0
    %vm472 = vcmask 1041409
    %v473 = vsel %vm472, %v449, %v448
    %vm474 = vcmask 1042434
    %v475 = vsel %vm474, %v450, %v473
    %vm476 = vcmask 1043459
    %v477 = vsel %vm476, %v451, %v475
    %vm478 = vcmask 1044484
    %v479 = vsel %vm478, %v452, %v477
    %vm480 = vcmask 1045509
    %v481 = vsel %vm480, %v453, %v479
    %vm482 = vcmask 1046534
    %v483 = vsel %vm482, %v454, %v481
    %vm484 = vcmask 1047559
    %v485 = vsel %vm484, %v455, %v483
    %v486 = vsel %vm59, %v485, 0
    %488 = vmatpush.msra.mxu0 0.0
    %489 = vmatpush.msra.mxu0 0.0
    %490 = vmatpush.msra.mxu0 0.0
    %491 = vmatpush.msra.mxu0 0.0
    %492 = vmatpush.msra.mxu0 0.0
    %493 = vmatpush.msra.mxu0 0.0
    %494 = vmatpush.msra.mxu0 0.0
    %495 = vmatpush.msra.mxu0 0.0
    %496 = vmatpush.msra.mxu0 0.0
    %497 = vmatpush.msra.mxu0 0.0
    %498 = vmatpush.msra.mxu0 0.0
    %499 = vmatpush.msra.mxu0 0.0
    %500 = vmatpush.msra.mxu0 %v459
    %501 = vmatpush.msra.mxu0 %v458
    %502 = vmatpush.msra.mxu0 %v457
    %503 = vmatpush.msra.mxu0 %v456
    %504 = vmatmul.f32.gmra.mxu0 %v486
    %v505 = vpop.f32.mrf.mxu0
    %v506 = vadd.f32 %v462, %v505
    %507 = vdwg.mxu0
    %v508 = vmax.f32 %v506, 0.0
    %v509 = vld [vmem:[#allocation3] sm:$0xff]
    %v510 = vld [vmem:[#allocation3 + $0x8] sm:$0xff]
    %v511 = vld [vmem:[#allocation3 + $0x10] sm:$0xff]
    %v512 = vld [vmem:[#allocation3 + $0x18] sm:$0xff]
    %v513 = vld [vmem:[%s7] sm:$0x1]
    %v515 = vperm.slane %v513, 0
    %v518 = vsel %vm59, %v508, 0
    %520 = vmatpush.msra.mxu0 0.0
    %521 = vmatpush.msra.mxu0 0.0
    %522 = vmatpush.msra.mxu0 0.0
    %523 = vmatpush.msra.mxu0 0.0
    %524 = vmatpush.msra.mxu0 0.0
    %525 = vmatpush.msra.mxu0 0.0
    %526 = vmatpush.msra.mxu0 0.0
    %527 = vmatpush.msra.mxu0 0.0
    %528 = vmatpush.msra.mxu0 0.0
    %529 = vmatpush.msra.mxu0 0.0
    %530 = vmatpush.msra.mxu0 0.0
    %531 = vmatpush.msra.mxu0 0.0
    %532 = vmatpush.msra.mxu0 %v512
    %533 = vmatpush.msra.mxu0 %v511
    %534 = vmatpush.msra.mxu0 %v510
    %535 = vmatpush.msra.mxu0 %v509
    %536 = vmatmul.f32.gmra.mxu0 %v518
    %v537 = vpop.f32.mrf.mxu0
    %v538 = vadd.f32 %v515, %v537
    %539 = vdwg.mxu0
    %540 = vst [vmem:[#allocation6] sm:$0xff] %v538
    // Predicated region
    $region38: #{tpu_custom_call.1} parent=1 // pred_check
      _
    $region39: #{tpu_custom_call.1} parent=1 // pred_check_branch
      %542 = sbr.rel (0) target = $region41
    $region40: #{tpu_custom_call.1} parent=1 // pred_region
      %544 = vsyncadd [#allocation5], 0
      %s546 = sshll.u32 [#allocation6], 4
      %s547 = int_to_ptr.vmem [resolvable:$true] %s546
      %s548 = sshll.u32 %s8, 4
      %s549 = int_to_ptr.hbm [resolvable:$true] %s548
      %551 = dma.vmem_to_hbm [thread:$0]  %s547, 128, %s549, [#allocation5]
    $region41: #{tpu_custom_call.1} parent=1 // pred_fallthru
      _
    // Predicated region
    $region42: #{tpu_custom_call.1} parent=1 // pred_check
      _
    $region43: #{tpu_custom_call.1} parent=1 // pred_check_branch
      %553 = sbr.rel (0) target = $region45
    $region44: #{tpu_custom_call.1} parent=1 // pred_region
      %555 = dma.done [#allocation5], 128
    $region45: #{tpu_custom_call.1} parent=1 // pred_fallthru
      _
    %556 = vsyncpa [#allocation4], 1
    %557 = vsyncpa [#allocation5], 1

</llo_original>
